<compile_context>
chip_gen: v7x
topology: tpu7x:2x2x1
jax: 0.10.0
libtpu: 0.0.40
codegen_flags: <defaults>
</compile_context>

<pallas_src>
import functools

import jax
import jax.numpy as jnp
from jax import lax
from jax.experimental import pallas as pl
from jax.experimental.pallas import tpu as pltpu

BN_EPS = 1e-5


# --------------------------------------------------------------------------- kernels
def _upconv_stats_kernel(x_ref, r_ref, w_ref, mask_ref, y_ref, sum_ref, ssq_ref, *, wp, lout):
    """Fused bilinear upsample (+ conv zero-pad) + 3x3 conv + per-image BN partial sums.

    x_ref    : (Cin, H*W)      raw low-res image, spatially flattened (lane-dense)
    r_ref    : (H*W, Lpad)     resize matrix: bilinear align_corners + conv padding, flattened
                               row-major with row stride wp (grid-invariant, resident)
    w_ref    : (9, Cout, Cin)  per-tap conv weights (grid-invariant, resident)
    mask_ref : (1, Lout)       1.0 on valid output columns, 0.0 on the (wp - wo) junk columns
    y_ref    : (Cout, Lout)    un-normalized conv output (junk columns included, lane-dense)
    sum_ref  : (Cout, 1)       per-image per-channel sum over valid columns
    ssq_ref  : (Cout, 1)       per-image per-channel sum of squares over valid columns
    """
    # Upsample + pad, fused: one MXU matmul -> flattened padded image (Cin, Lpad).
    xr = jnp.dot(x_ref[...], r_ref[...], preferred_element_type=jnp.float32)
    cout = w_ref.shape[1]
    acc = jnp.zeros((cout, lout), jnp.float32)
    for t in range(9):                                       # static unroll: 9 taps
        s = (t // 3) * wp + (t % 3)                          # static lane shift
        acc = acc + jnp.dot(w_ref[t], xr[:, s:s + lout],
                            preferred_element_type=jnp.float32)
    # NOTE: conv bias intentionally omitted -- cancelled exactly by train-mode BN mean subtraction.
    y_ref[...] = acc
    yv = acc * mask_ref[...]                                 # zero out the junk columns
    sum_ref[...] = jnp.sum(yv, axis=1, keepdims=True)
    ssq_ref[...] = jnp.sum(yv * yv, axis=1, keepdims=True)


def _bn_relu_kernel(y_ref, a_ref, b_ref, o_ref):
    """Folded BatchNorm (per-channel scale/shift) + ReLU, lane-dense over flat spatial."""
    o_ref[...] = jnp.maximum(y_ref[...] * a_ref[...] + b_ref[...], 0.0)


# --------------------------------------------------------------------------- wrapper glue
def _interp_matrix(in_size, out_size):
    """Matrix form of F.interpolate(mode='bilinear', align_corners=True) along one axis."""
    if out_size == 1:
        src = jnp.zeros((1,), jnp.float32)
    else:
        src = jnp.arange(out_size, dtype=jnp.float32) * ((in_size - 1) / (out_size - 1))
    i0 = jnp.clip(jnp.floor(src).astype(jnp.int32), 0, in_size - 1)
    i1 = jnp.clip(i0 + 1, 0, in_size - 1)
    frac = src - i0.astype(jnp.float32)
    rows = jnp.arange(out_size)
    m = jnp.zeros((out_size, in_size), jnp.float32)
    m = m.at[rows, i0].add(1.0 - frac)
    m = m.at[rows, i1].add(frac)
    return m


@functools.partial(jax.jit, static_argnames=("out_hw",))
def _up_conv_impl(x, conv_w, conv_b, bn_gamma, bn_beta, *, out_hw):
    n, cin, h, w = x.shape
    ho, wo = out_hw
    cout = conv_w.shape[0]
    hw = h * w
    wp = wo + 2                       # padded row stride (conv padding=1)
    hpp = ho + 3                      # 1 top zero row + ho rows + 2 trailing zero rows (slice slack)
    lpad = hpp * wp
    lout = ho * wp

    # conv bias is unused: exactly cancelled by train-mode BN mean subtraction.
    del conv_b

    # Combined resize matrix: bilinear (align_corners=True) row/col interpolation with the conv
    # zero-padding folded in, flattened row-major (stride wp) so 3x3 taps become lane shifts.
    # Built once on host side of the jit; resident in VMEM inside kernel A.
    rh = jnp.zeros((hpp, h), jnp.float32).at[1:ho + 1].set(_interp_matrix(h, ho))     # (hpp, h)
    rw = jnp.zeros((w, wp), jnp.float32).at[:, 1:wo + 1].set(_interp_matrix(w, wo).T)  # (w, wp)
    r_up = jnp.einsum('ih,wj->hwij', rh, rw).reshape(hw, lpad)                          # (H*W, Lpad)

    # Per-tap weights (9, Cout, Cin) and valid-column mask.
    w_taps = conv_w.astype(jnp.float32).transpose(2, 3, 0, 1).reshape(9, cout, cin)
    mask = ((jnp.arange(lout) % wp) < wo).astype(jnp.float32).reshape(1, lout)
    x_flat = x.astype(jnp.float32).reshape(n, cin, hw)        # contiguous reshape (free)

    vmem_limit = 32 * 1024 * 1024

    # ---- pass 1: fused upsample + conv + per-image BN partial statistics --------------------
    kern_a = functools.partial(_upconv_stats_kernel, wp=wp, lout=lout)
    y_conv, ch_sum, ch_ssq = pl.pallas_call(
        kern_a,
        grid=(n,),
        in_specs=[
            pl.BlockSpec((None, cin, hw), lambda i: (i, 0, 0)),     # per-image low-res activation
            pl.BlockSpec((hw, lpad), lambda i: (0, 0)),             # resident resize matrix
            pl.BlockSpec((9, cout, cin), lambda i: (0, 0, 0)),      # resident conv weights
            pl.BlockSpec((1, lout), lambda i: (0, 0)),              # resident valid mask
        ],
        out_specs=[
            pl.BlockSpec((None, cout, lout), lambda i: (i, 0, 0)),
            pl.BlockSpec((None, cout, 1), lambda i: (i, 0, 0)),
            pl.BlockSpec((None, cout, 1), lambda i: (i, 0, 0)),
        ],
        out_shape=[
            jax.ShapeDtypeStruct((n, cout, lout), jnp.float32),
            jax.ShapeDtypeStruct((n, cout, 1), jnp.float32),
            jax.ShapeDtypeStruct((n, cout, 1), jnp.float32),
        ],
        compiler_params=pltpu.CompilerParams(
            dimension_semantics=("parallel",), vmem_limit_bytes=vmem_limit),
        cost_estimate=pl.CostEstimate(
            flops=n * (2 * cin * hw * lpad + 2 * 9 * cout * cin * lout + 4 * cout * lout),
            transcendentals=0,
            bytes_accessed=4 * (n * cin * hw + n * cout * (lout + 2)
                                + hw * lpad + 9 * cout * cin + lout)),
    )(x_flat, r_up, w_taps, mask)

    # ---- combine tiny partial sums -> global train-mode BN stats, fold into scale/shift ----
    cnt = float(n * ho * wo)
    gamma = bn_gamma.astype(jnp.float32)
    beta = bn_beta.astype(jnp.float32)
    mean = jnp.sum(ch_sum[:, :, 0], axis=0) / cnt                          # (Cout,)
    # E[y^2] - mean^2, clipped at 0 to guard against cancellation for large channel means.
    var = jnp.maximum(jnp.sum(ch_ssq[:, :, 0], axis=0) / cnt - mean * mean, 0.0)
    inv = lax.rsqrt(var + BN_EPS)
    scale = (gamma * inv).reshape(cout, 1)
    shift = (beta - mean * gamma * inv).reshape(cout, 1)

    # ---- pass 2: normalize + ReLU (lane-dense loads/stores) ---------------------------------
    out_flat = pl.pallas_call(
        _bn_relu_kernel,
        grid=(n,),
        in_specs=[
            pl.BlockSpec((None, cout, lout), lambda i: (i, 0, 0)),
            pl.BlockSpec((cout, 1), lambda i: (0, 0)),
            pl.BlockSpec((cout, 1), lambda i: (0, 0)),
        ],
        out_specs=pl.BlockSpec((None, cout, lout), lambda i: (i, 0, 0)),
        out_shape=jax.ShapeDtypeStruct((n, cout, lout), jnp.float32),
        compiler_params=pltpu.CompilerParams(
            dimension_semantics=("parallel",), vmem_limit_bytes=vmem_limit),
        cost_estimate=pl.CostEstimate(
            flops=3 * n * cout * lout,
            transcendentals=0,
            bytes_accessed=4 * (2 * n * cout * lout + 4 * cout)),
    )(y_conv, scale, shift)

    # Drop the (wp - wo) junk columns; result is already NCHW -- no transpose anywhere.
    return out_flat.reshape(n, cout, ho, wp)[:, :, :, :wo]


def up_conv_forward(x, y, conv_w, conv_b, bn_gamma, bn_beta):
    """x: (N, Cin, Hx, Wx), y: (N, *, Ho, Wo) (only its spatial size is used)."""
    return _up_conv_impl(x, conv_w, conv_b, bn_gamma, bn_beta,
                         out_hw=(int(y.shape[2]), int(y.shape[3])))


# --------------------------------------------------------------------------- test
if __name__ == "__main__":
    key = jax.random.PRNGKey(0)
    k_x, k_y, k_w, k_b, k_g, k_bt = jax.random.split(key, 6)

    in_ch, out_ch = 4, 8
    x = jax.random.normal(k_x, (2, in_ch, 8, 8), dtype=jnp.float32)       # low-res input
    y = jax.random.normal(k_y, (2, 6, 16, 16), dtype=jnp.float32)         # only spatial size used

    conv_w = jax.random.normal(k_w, (out_ch, in_ch, 3, 3), dtype=jnp.float32) * 0.1
    conv_b = jax.random.normal(k_b, (out_ch,), dtype=jnp.float32) * 0.1
    bn_gamma = 1.0 + 0.1 * jax.random.normal(k_g, (out_ch,), dtype=jnp.float32)
    bn_beta = 0.1 * jax.random.normal(k_bt, (out_ch,), dtype=jnp.float32)

    out = up_conv_forward(x, y, conv_w, conv_b, bn_gamma, bn_beta)
    out = jax.block_until_ready(out)
    assert out.shape == (2, out_ch, 16, 16)

    # Pure-JAX reference of the PyTorch forward (upsample -> conv(+bias) -> BN(train) -> ReLU).
    rh16 = _interp_matrix(8, 16)
    xr = jnp.einsum('oh,nchw,pw->ncop', rh16, x, rh16)
    z = lax.conv_general_dilated(xr, conv_w, (1, 1), ((1, 1), (1, 1)),
                                 dimension_numbers=('NCHW', 'OIHW', 'NCHW'))
    z = z + conv_b[None, :, None, None]
    mu = z.mean(axis=(0, 2, 3), keepdims=True)
    var = ((z - mu) ** 2).mean(axis=(0, 2, 3), keepdims=True)
    ref = jnp.maximum((z - mu) * lax.rsqrt(var + BN_EPS) * bn_gamma[None, :, None, None]
                      + bn_beta[None, :, None, None], 0.0)
    assert jnp.allclose(out, ref, atol=2e-4, rtol=2e-4), float(jnp.max(jnp.abs(out - ref)))

    print("KERNEL_OK")
</pallas_src>

<mosaic_0001>
module attributes {stable_mosaic.version = 11 : i64} {
  func.func private @main(%arg0: i32) attributes {dimension_semantics = [#tpu.dimension_semantics<core_parallel>], iteration_bounds = array<i64: 2>, tpu.core_type = #tpu.core_type<sc_scalar_subcore>, window_params = []} {
    return
  }
}

module attributes {stable_mosaic.version = 11 : i64} {
  func.func private @main(%arg0: i32) attributes {dimension_semantics = [#tpu.dimension_semantics<core_parallel>], iteration_bounds = array<i64: 2>, tpu.core_type = #tpu.core_type<sc_scalar_subcore>, window_params = []} {
    return
  }
}

module attributes {stable_mosaic.version = 11 : i64} {
  func.func @_upconv_stats_kernel(%arg0: i32, %arg1: memref<1x4x64xf32, #tpu.memory_space<vmem>>, %arg2: memref<64x342xf32, #tpu.memory_space<vmem>>, %arg3: memref<9x8x4xf32, #tpu.memory_space<vmem>>, %arg4: memref<1x288xf32, #tpu.memory_space<vmem>>, %arg5: memref<1x8x288xf32, #tpu.memory_space<vmem>>, %arg6: memref<1x8x1xf32, #tpu.memory_space<vmem>>, %arg7: memref<1x8x1xf32, #tpu.memory_space<vmem>>) attributes {dimension_semantics = [#tpu.dimension_semantics<parallel>], iteration_bounds = array<i64: 2>, scalar_prefetch = 0 : i64, scratch_operands = 0 : i64, tpu.core_type = #tpu.core_type<tc>, window_params = [{transform_indices = @transform_0, window_bounds = array<i64: 1, 4, 64>}, {pipeline_mode = #tpu.pipeline_mode<synchronous>, transform_indices = @transform_1, window_bounds = array<i64: 64, 342>}, {pipeline_mode = #tpu.pipeline_mode<synchronous>, transform_indices = @transform_2, window_bounds = array<i64: 9, 8, 4>}, {pipeline_mode = #tpu.pipeline_mode<synchronous>, transform_indices = @transform_3, window_bounds = array<i64: 1, 288>}, {transform_indices = @transform_4, window_bounds = array<i64: 1, 8, 288>}, {transform_indices = @transform_5, window_bounds = array<i64: 1, 8, 1>}, {transform_indices = @transform_6, window_bounds = array<i64: 1, 8, 1>}]} {
    %c0 = arith.constant 0 : index
    %c0_0 = arith.constant 0 : index
    %c0_1 = arith.constant 0 : index
    %0 = vector.load %arg1[%c0, %c0_0, %c0_1] : memref<1x4x64xf32, #tpu.memory_space<vmem>>, vector<1x4x64xf32>
    %1 = vector.shape_cast %0 : vector<1x4x64xf32> to vector<4x64xf32>
    %c0_2 = arith.constant 0 : index
    %c0_3 = arith.constant 0 : index
    %2 = vector.load %arg2[%c0_2, %c0_3] : memref<64x342xf32, #tpu.memory_space<vmem>>, vector<64x342xf32>
    %cst = arith.constant dense<0.000000e+00> : vector<4x342xf32>
    %3 = tpu.matmul %1, %2, %cst {dimension_numbers = #tpu.dot_dimension_numbers<[1], [0], [0], [1], [0, 0, 1, 1], [], []>} : vector<4x64xf32>, vector<64x342xf32>, vector<4x342xf32> -> vector<4x342xf32>
    %cst_4 = arith.constant 0.000000e+00 : f32
    %4 = vector.broadcast %cst_4 : f32 to vector<8x288xf32>
    %c0_5 = arith.constant 0 : index
    %c0_6 = arith.constant 0 : index
    %c0_7 = arith.constant 0 : index
    %5 = vector.load %arg3[%c0_5, %c0_6, %c0_7] : memref<9x8x4xf32, #tpu.memory_space<vmem>>, vector<1x8x4xf32>
    %6 = vector.shape_cast %5 : vector<1x8x4xf32> to vector<8x4xf32>
    %7 = vector.extract_strided_slice %3 {offsets = [0, 0], sizes = [4, 288], strides = [1, 1]} : vector<4x342xf32> to vector<4x288xf32>
    %cst_8 = arith.constant dense<0.000000e+00> : vector<8x288xf32>
    %8 = tpu.matmul %6, %7, %cst_8 {dimension_numbers = #tpu.dot_dimension_numbers<[1], [0], [0], [1], [0, 0, 1, 1], [], []>} : vector<8x4xf32>, vector<4x288xf32>, vector<8x288xf32> -> vector<8x288xf32>
    %9 = arith.addf %4, %8 : vector<8x288xf32>
    %c1 = arith.constant 1 : index
    %c0_9 = arith.constant 0 : index
    %c0_10 = arith.constant 0 : index
    %10 = vector.load %arg3[%c1, %c0_9, %c0_10] : memref<9x8x4xf32, #tpu.memory_space<vmem>>, vector<1x8x4xf32>
    %11 = vector.shape_cast %10 : vector<1x8x4xf32> to vector<8x4xf32>
    %12 = vector.extract_strided_slice %3 {offsets = [0, 1], sizes = [4, 288], strides = [1, 1]} : vector<4x342xf32> to vector<4x288xf32>
    %cst_11 = arith.constant dense<0.000000e+00> : vector<8x288xf32>
    %13 = tpu.matmul %11, %12, %cst_11 {dimension_numbers = #tpu.dot_dimension_numbers<[1], [0], [0], [1], [0, 0, 1, 1], [], []>} : vector<8x4xf32>, vector<4x288xf32>, vector<8x288xf32> -> vector<8x288xf32>
    %14 = arith.addf %9, %13 : vector<8x288xf32>
    %c2 = arith.constant 2 : index
    %c0_12 = arith.constant 0 : index
    %c0_13 = arith.constant 0 : index
    %15 = vector.load %arg3[%c2, %c0_12, %c0_13] : memref<9x8x4xf32, #tpu.memory_space<vmem>>, vector<1x8x4xf32>
    %16 = vector.shape_cast %15 : vector<1x8x4xf32> to vector<8x4xf32>
    %17 = vector.extract_strided_slice %3 {offsets = [0, 2], sizes = [4, 288], strides = [1, 1]} : vector<4x342xf32> to vector<4x288xf32>
    %cst_14 = arith.constant dense<0.000000e+00> : vector<8x288xf32>
    %18 = tpu.matmul %16, %17, %cst_14 {dimension_numbers = #tpu.dot_dimension_numbers<[1], [0], [0], [1], [0, 0, 1, 1], [], []>} : vector<8x4xf32>, vector<4x288xf32>, vector<8x288xf32> -> vector<8x288xf32>
    %19 = arith.addf %14, %18 : vector<8x288xf32>
    %c3 = arith.constant 3 : index
    %c0_15 = arith.constant 0 : index
    %c0_16 = arith.constant 0 : index
    %20 = vector.load %arg3[%c3, %c0_15, %c0_16] : memref<9x8x4xf32, #tpu.memory_space<vmem>>, vector<1x8x4xf32>
    %21 = vector.shape_cast %20 : vector<1x8x4xf32> to vector<8x4xf32>
    %22 = vector.extract_strided_slice %3 {offsets = [0, 18], sizes = [4, 288], strides = [1, 1]} : vector<4x342xf32> to vector<4x288xf32>
    %cst_17 = arith.constant dense<0.000000e+00> : vector<8x288xf32>
    %23 = tpu.matmul %21, %22, %cst_17 {dimension_numbers = #tpu.dot_dimension_numbers<[1], [0], [0], [1], [0, 0, 1, 1], [], []>} : vector<8x4xf32>, vector<4x288xf32>, vector<8x288xf32> -> vector<8x288xf32>
    %24 = arith.addf %19, %23 : vector<8x288xf32>
    %c4 = arith.constant 4 : index
    %c0_18 = arith.constant 0 : index
    %c0_19 = arith.constant 0 : index
    %25 = vector.load %arg3[%c4, %c0_18, %c0_19] : memref<9x8x4xf32, #tpu.memory_space<vmem>>, vector<1x8x4xf32>
    %26 = vector.shape_cast %25 : vector<1x8x4xf32> to vector<8x4xf32>
    %27 = vector.extract_strided_slice %3 {offsets = [0, 19], sizes = [4, 288], strides = [1, 1]} : vector<4x342xf32> to vector<4x288xf32>
    %cst_20 = arith.constant dense<0.000000e+00> : vector<8x288xf32>
    %28 = tpu.matmul %26, %27, %cst_20 {dimension_numbers = #tpu.dot_dimension_numbers<[1], [0], [0], [1], [0, 0, 1, 1], [], []>} : vector<8x4xf32>, vector<4x288xf32>, vector<8x288xf32> -> vector<8x288xf32>
    %29 = arith.addf %24, %28 : vector<8x288xf32>
    %c5 = arith.constant 5 : index
    %c0_21 = arith.constant 0 : index
    %c0_22 = arith.constant 0 : index
    %30 = vector.load %arg3[%c5, %c0_21, %c0_22] : memref<9x8x4xf32, #tpu.memory_space<vmem>>, vector<1x8x4xf32>
    %31 = vector.shape_cast %30 : vector<1x8x4xf32> to vector<8x4xf32>
    %32 = vector.extract_strided_slice %3 {offsets = [0, 20], sizes = [4, 288], strides = [1, 1]} : vector<4x342xf32> to vector<4x288xf32>
    %cst_23 = arith.constant dense<0.000000e+00> : vector<8x288xf32>
    %33 = tpu.matmul %31, %32, %cst_23 {dimension_numbers = #tpu.dot_dimension_numbers<[1], [0], [0], [1], [0, 0, 1, 1], [], []>} : vector<8x4xf32>, vector<4x288xf32>, vector<8x288xf32> -> vector<8x288xf32>
    %34 = arith.addf %29, %33 : vector<8x288xf32>
    %c6 = arith.constant 6 : index
    %c0_24 = arith.constant 0 : index
    %c0_25 = arith.constant 0 : index
    %35 = vector.load %arg3[%c6, %c0_24, %c0_25] : memref<9x8x4xf32, #tpu.memory_space<vmem>>, vector<1x8x4xf32>
    %36 = vector.shape_cast %35 : vector<1x8x4xf32> to vector<8x4xf32>
    %37 = vector.extract_strided_slice %3 {offsets = [0, 36], sizes = [4, 288], strides = [1, 1]} : vector<4x342xf32> to vector<4x288xf32>
    %cst_26 = arith.constant dense<0.000000e+00> : vector<8x288xf32>
    %38 = tpu.matmul %36, %37, %cst_26 {dimension_numbers = #tpu.dot_dimension_numbers<[1], [0], [0], [1], [0, 0, 1, 1], [], []>} : vector<8x4xf32>, vector<4x288xf32>, vector<8x288xf32> -> vector<8x288xf32>
    %39 = arith.addf %34, %38 : vector<8x288xf32>
    %c7 = arith.constant 7 : index
    %c0_27 = arith.constant 0 : index
    %c0_28 = arith.constant 0 : index
    %40 = vector.load %arg3[%c7, %c0_27, %c0_28] : memref<9x8x4xf32, #tpu.memory_space<vmem>>, vector<1x8x4xf32>
    %41 = vector.shape_cast %40 : vector<1x8x4xf32> to vector<8x4xf32>
    %42 = vector.extract_strided_slice %3 {offsets = [0, 37], sizes = [4, 288], strides = [1, 1]} : vector<4x342xf32> to vector<4x288xf32>
    %cst_29 = arith.constant dense<0.000000e+00> : vector<8x288xf32>
    %43 = tpu.matmul %41, %42, %cst_29 {dimension_numbers = #tpu.dot_dimension_numbers<[1], [0], [0], [1], [0, 0, 1, 1], [], []>} : vector<8x4xf32>, vector<4x288xf32>, vector<8x288xf32> -> vector<8x288xf32>
    %44 = arith.addf %39, %43 : vector<8x288xf32>
    %c8 = arith.constant 8 : index
    %c0_30 = arith.constant 0 : index
    %c0_31 = arith.constant 0 : index
    %45 = vector.load %arg3[%c8, %c0_30, %c0_31] : memref<9x8x4xf32, #tpu.memory_space<vmem>>, vector<1x8x4xf32>
    %46 = vector.shape_cast %45 : vector<1x8x4xf32> to vector<8x4xf32>
    %47 = vector.extract_strided_slice %3 {offsets = [0, 38], sizes = [4, 288], strides = [1, 1]} : vector<4x342xf32> to vector<4x288xf32>
    %cst_32 = arith.constant dense<0.000000e+00> : vector<8x288xf32>
    %48 = tpu.matmul %46, %47, %cst_32 {dimension_numbers = #tpu.dot_dimension_numbers<[1], [0], [0], [1], [0, 0, 1, 1], [], []>} : vector<8x4xf32>, vector<4x288xf32>, vector<8x288xf32> -> vector<8x288xf32>
    %49 = arith.addf %44, %48 : vector<8x288xf32>
    %c0_33 = arith.constant 0 : index
    %c0_34 = arith.constant 0 : index
    %c0_35 = arith.constant 0 : index
    %50 = vector.load %arg5[%c0_33, %c0_34, %c0_35] : memref<1x8x288xf32, #tpu.memory_space<vmem>>, vector<1x8x288xf32>
    %51 = vector.shape_cast %50 : vector<1x8x288xf32> to vector<8x288xf32>
    %52 = vector.shape_cast %49 : vector<8x288xf32> to vector<1x8x288xf32>
    tpu.vector_store %arg5[%c0_33, %c0_34, %c0_35], %52 {strides = array<i32>} : memref<1x8x288xf32, #tpu.memory_space<vmem>>, vector<1x8x288xf32>,
    %c0_36 = arith.constant 0 : index
    %c0_37 = arith.constant 0 : index
    %53 = vector.load %arg4[%c0_36, %c0_37] : memref<1x288xf32, #tpu.memory_space<vmem>>, vector<1x288xf32>
    %54 = vector.broadcast %53 : vector<1x288xf32> to vector<8x288xf32>
    %55 = arith.mulf %49, %54 : vector<8x288xf32>
    %cst_38 = arith.constant dense<0.000000e+00> : vector<8xf32>
    %56 = vector.multi_reduction <add>, %55, %cst_38 [1] : vector<8x288xf32> to vector<8xf32>
    %57 = vector.shape_cast %56 : vector<8xf32> to vector<8x1xf32>
    %c0_39 = arith.constant 0 : index
    %c0_40 = arith.constant 0 : index
    %c0_41 = arith.constant 0 : index
    %58 = vector.load %arg6[%c0_39, %c0_40, %c0_41] : memref<1x8x1xf32, #tpu.memory_space<vmem>>, vector<1x8x1xf32>
    %59 = vector.shape_cast %58 : vector<1x8x1xf32> to vector<8x1xf32>
    %60 = vector.shape_cast %57 : vector<8x1xf32> to vector<1x8x1xf32>
    tpu.vector_store %arg6[%c0_39, %c0_40, %c0_41], %60 {strides = array<i32>} : memref<1x8x1xf32, #tpu.memory_space<vmem>>, vector<1x8x1xf32>,
    %61 = arith.mulf %55, %55 : vector<8x288xf32>
    %cst_42 = arith.constant dense<0.000000e+00> : vector<8xf32>
    %62 = vector.multi_reduction <add>, %61, %cst_42 [1] : vector<8x288xf32> to vector<8xf32>
    %63 = vector.shape_cast %62 : vector<8xf32> to vector<8x1xf32>
    %c0_43 = arith.constant 0 : index
    %c0_44 = arith.constant 0 : index
    %c0_45 = arith.constant 0 : index
    %64 = vector.load %arg7[%c0_43, %c0_44, %c0_45] : memref<1x8x1xf32, #tpu.memory_space<vmem>>, vector<1x8x1xf32>
    %65 = vector.shape_cast %64 : vector<1x8x1xf32> to vector<8x1xf32>
    %66 = vector.shape_cast %63 : vector<8x1xf32> to vector<1x8x1xf32>
    tpu.vector_store %arg7[%c0_43, %c0_44, %c0_45], %66 {strides = array<i32>} : memref<1x8x1xf32, #tpu.memory_space<vmem>>, vector<1x8x1xf32>,
    return
  }
  func.func @transform_0(%arg0: i32) -> (i32, i32, i32) {
    %c0_i32 = arith.constant 0 : i32
    %c0_i32_0 = arith.constant 0 : i32
    %c0_i32_1 = arith.constant 0 : i32
    return %arg0, %c0_i32, %c0_i32_0 : i32, i32, i32
  }
  func.func @transform_1(%arg0: i32) -> (i32, i32) {
    %c0_i32 = arith.constant 0 : i32
    %c0_i32_0 = arith.constant 0 : i32
    %c0_i32_1 = arith.constant 0 : i32
    return %c0_i32, %c0_i32_0 : i32, i32
  }
  func.func @transform_2(%arg0: i32) -> (i32, i32, i32) {
    %c0_i32 = arith.constant 0 : i32
    %c0_i32_0 = arith.constant 0 : i32
    %c0_i32_1 = arith.constant 0 : i32
    %c0_i32_2 = arith.constant 0 : i32
    return %c0_i32, %c0_i32_0, %c0_i32_1 : i32, i32, i32
  }
  func.func @transform_3(%arg0: i32) -> (i32, i32) {
    %c0_i32 = arith.constant 0 : i32
    %c0_i32_0 = arith.constant 0 : i32
    %c0_i32_1 = arith.constant 0 : i32
    return %c0_i32, %c0_i32_0 : i32, i32
  }
  func.func @transform_4(%arg0: i32) -> (i32, i32, i32) {
    %c0_i32 = arith.constant 0 : i32
    %c0_i32_0 = arith.constant 0 : i32
    %c0_i32_1 = arith.constant 0 : i32
    return %arg0, %c0_i32, %c0_i32_0 : i32, i32, i32
  }
  func.func @transform_5(%arg0: i32) -> (i32, i32, i32) {
    %c0_i32 = arith.constant 0 : i32
    %c0_i32_0 = arith.constant 0 : i32
    %c0_i32_1 = arith.constant 0 : i32
    return %arg0, %c0_i32, %c0_i32_0 : i32, i32, i32
  }
  func.func @transform_6(%arg0: i32) -> (i32, i32, i32) {
    %c0_i32 = arith.constant 0 : i32
    %c0_i32_0 = arith.constant 0 : i32
    %c0_i32_1 = arith.constant 0 : i32
    return %arg0, %c0_i32, %c0_i32_0 : i32, i32, i32
  }
}

module attributes {stable_mosaic.version = 11 : i64} {
  func.func @_bn_relu_kernel(%arg0: i32, %arg1: memref<1x8x288xf32, #tpu.memory_space<vmem>>, %arg2: memref<8x1xf32, #tpu.memory_space<vmem>>, %arg3: memref<8x1xf32, #tpu.memory_space<vmem>>, %arg4: memref<1x8x288xf32, #tpu.memory_space<vmem>>) attributes {dimension_semantics = [#tpu.dimension_semantics<parallel>], iteration_bounds = array<i64: 2>, scalar_prefetch = 0 : i64, scratch_operands = 0 : i64, tpu.core_type = #tpu.core_type<tc>, window_params = [{transform_indices = @transform_0, window_bounds = array<i64: 1, 8, 288>}, {pipeline_mode = #tpu.pipeline_mode<synchronous>, transform_indices = @transform_1, window_bounds = array<i64: 8, 1>}, {pipeline_mode = #tpu.pipeline_mode<synchronous>, transform_indices = @transform_2, window_bounds = array<i64: 8, 1>}, {transform_indices = @transform_3, window_bounds = array<i64: 1, 8, 288>}]} {
    %c0 = arith.constant 0 : index
    %c0_0 = arith.constant 0 : index
    %c0_1 = arith.constant 0 : index
    %0 = vector.load %arg1[%c0, %c0_0, %c0_1] : memref<1x8x288xf32, #tpu.memory_space<vmem>>, vector<1x8x288xf32>
    %1 = vector.shape_cast %0 : vector<1x8x288xf32> to vector<8x288xf32>
    %c0_2 = arith.constant 0 : index
    %c0_3 = arith.constant 0 : index
    %2 = vector.load %arg2[%c0_2, %c0_3] : memref<8x1xf32, #tpu.memory_space<vmem>>, vector<8x1xf32>
    %3 = vector.broadcast %2 : vector<8x1xf32> to vector<8x288xf32>
    %4 = arith.mulf %1, %3 : vector<8x288xf32>
    %c0_4 = arith.constant 0 : index
    %c0_5 = arith.constant 0 : index
    %5 = vector.load %arg3[%c0_4, %c0_5] : memref<8x1xf32, #tpu.memory_space<vmem>>, vector<8x1xf32>
    %6 = vector.broadcast %5 : vector<8x1xf32> to vector<8x288xf32>
    %7 = arith.addf %4, %6 : vector<8x288xf32>
    %cst = arith.constant 0.000000e+00 : f32
    %8 = vector.broadcast %cst : f32 to vector<8x288xf32>
    %9 = arith.maximumf %7, %8 : vector<8x288xf32>
    %c0_6 = arith.constant 0 : index
    %c0_7 = arith.constant 0 : index
    %c0_8 = arith.constant 0 : index
    %10 = vector.load %arg4[%c0_6, %c0_7, %c0_8] : memref<1x8x288xf32, #tpu.memory_space<vmem>>, vector<1x8x288xf32>
    %11 = vector.shape_cast %10 : vector<1x8x288xf32> to vector<8x288xf32>
    %12 = vector.shape_cast %9 : vector<8x288xf32> to vector<1x8x288xf32>
    tpu.vector_store %arg4[%c0_6, %c0_7, %c0_8], %12 {strides = array<i32>} : memref<1x8x288xf32, #tpu.memory_space<vmem>>, vector<1x8x288xf32>,
    return
  }
  func.func @transform_0(%arg0: i32) -> (i32, i32, i32) {
    %c0_i32 = arith.constant 0 : i32
    %c0_i32_0 = arith.constant 0 : i32
    %c0_i32_1 = arith.constant 0 : i32
    return %arg0, %c0_i32, %c0_i32_0 : i32, i32, i32
  }
  func.func @transform_1(%arg0: i32) -> (i32, i32) {
    %c0_i32 = arith.constant 0 : i32
    %c0_i32_0 = arith.constant 0 : i32
    %c0_i32_1 = arith.constant 0 : i32
    return %c0_i32, %c0_i32_0 : i32, i32
  }
  func.func @transform_2(%arg0: i32) -> (i32, i32) {
    %c0_i32 = arith.constant 0 : i32
    %c0_i32_0 = arith.constant 0 : i32
    %c0_i32_1 = arith.constant 0 : i32
    return %c0_i32, %c0_i32_0 : i32, i32
  }
  func.func @transform_3(%arg0: i32) -> (i32, i32, i32) {
    %c0_i32 = arith.constant 0 : i32
    %c0_i32_0 = arith.constant 0 : i32
    %c0_i32_1 = arith.constant 0 : i32
    return %arg0, %c0_i32, %c0_i32_0 : i32, i32, i32
  }
}

</mosaic_0001>

<llo_original>
// kernel: _up_conv_impl.3
$region0: #{_up_conv_impl.3}
  #allocation0 [shape = 'u32[]', space=smem, size = 0x4, offset = 0x4, fixed_abs, tag = 'smem constant byte address 0x4 - core index']
  #allocation1 [shape = 'u32[144,128]{1,0:T(1,128)}', space=vmem, size = 0x12000, scoped, tag = 'internal scratch']
  %s0 = inlined_call_operand.vmem [shape: f32[2,8,288], index: 0, kind: input, shape index: {}]
  %s1 = inlined_call_operand.vmem [shape: f32[8,1], index: 1, kind: input, shape index: {}]
  %s2 = inlined_call_operand.vmem [shape: f32[8,1], index: 2, kind: input, shape index: {}]
  %s3 = inlined_call_operand.vmem [shape: f32[2,8,288], index: 3, kind: output, shape index: {}]
  %s4 = sld [smem:[#allocation0]]
  $region45: #{_up_conv_impl.3} parent=0
    _
  %s6 = ssub.s32 1, %s4
  %s7 = scalar_select 0, %s6, %s4
  loop: start=0, step=1, limit=4
  $region2: #{_up_conv_impl.3} parent=0 // loop_pre_header
    _
  $region3: #{_up_conv_impl.3} parent=0 // loop_header
    %s9 = sphi 0, %s13
    %p10 = scmp.ge.s32.totalorder %s9, 4
    %s19 = sphi 0, %s21
    %s22 = sphi 0, %s19
    %s23 = sphi 0, %s22
    %s39 = sphi 0, %s23
    %s43 = sphi 0, %s43
    %s45 = sphi 0, %s43
    %s46 = sphi 0, %s45
    %s60 = sphi 0, %s46
    %s64 = sphi 0, %s64
    %s66 = sphi 0, %s64
    %s67 = sphi 0, %s66
    %s81 = sphi 0, %s67
    %s87 = sphi 0, %s89
    %s90 = sphi 0, %s87
    %s91 = sphi 0, %s90
    %s107 = sphi 0, %s91
  $region4: #{_up_conv_impl.3} parent=0 // loop_header_branch
    %12 = sbr.rel (%p10) target = $region8
  $region5: #{_up_conv_impl.3} parent=0 // loop_body
    %s14 = ssub.s32 %s9, 1
    %s15 = ssub.s32 %s9, 2
    %s16 = sadd.s32 %s9, 1
    %s17 = ssub.s32 %s9, %s16
    %p18 = scmp.eq.s32.totalorder %s17, 0
    %s20 = sadd.s32 %s19, 1
    %s21 = scalar_select %p18, %s19, %s20
    %p24 = pneg %p18
    %p25 = scmp.eq.s32.totalorder %s9, 1
    %p26 = por %p24, %p25
    %p27 = scmp.ne.s32.totalorder %s19, %s22
    %p28 = scmp.eq.s32.totalorder %s9, 0
    %p29 = por %p27, %p28
    %p30 = scmp.ne.s32.totalorder %s19, %s22
    %p31 = scmp.eq.s32.totalorder %s14, 1
    %p32 = por %p30, %p31
    %p33 = scmp.ne.s32.totalorder %s22, %s23
    %p34 = scmp.eq.s32.totalorder %s14, 0
    %p35 = por %p33, %p34
    %p36 = scmp.ne.s32.totalorder %s22, %s23
    %p37 = scmp.eq.s32.totalorder %s15, 1
    %p38 = por %p36, %p37
    %p40 = scmp.ne.s32.totalorder %s23, %s39
    %p41 = scmp.eq.s32.totalorder %s15, 0
    %p42 = por %p40, %p41
    %s44 = sadd.s32 %s43, 1
    %p47 = scmp.eq.s32.totalorder %s9, 1
    %p48 = scmp.ne.s32.totalorder %s43, %s45
    %p49 = scmp.eq.s32.totalorder %s9, 0
    %p50 = por %p48, %p49
    %p51 = scmp.ne.s32.totalorder %s43, %s45
    %p52 = scmp.eq.s32.totalorder %s14, 1
    %p53 = por %p51, %p52
    %p54 = scmp.ne.s32.totalorder %s45, %s46
    %p55 = scmp.eq.s32.totalorder %s14, 0
    %p56 = por %p54, %p55
    %p57 = scmp.ne.s32.totalorder %s45, %s46
    %p58 = scmp.eq.s32.totalorder %s15, 1
    %p59 = por %p57, %p58
    %p61 = scmp.ne.s32.totalorder %s46, %s60
    %p62 = scmp.eq.s32.totalorder %s15, 0
    %p63 = por %p61, %p62
    %s65 = sadd.s32 %s64, 1
    %p68 = scmp.eq.s32.totalorder %s9, 1
    %p69 = scmp.ne.s32.totalorder %s64, %s66
    %p70 = scmp.eq.s32.totalorder %s9, 0
    %p71 = por %p69, %p70
    %p72 = scmp.ne.s32.totalorder %s64, %s66
    %p73 = scmp.eq.s32.totalorder %s14, 1
    %p74 = por %p72, %p73
    %p75 = scmp.ne.s32.totalorder %s66, %s67
    %p76 = scmp.eq.s32.totalorder %s14, 0
    %p77 = por %p75, %p76
    %p78 = scmp.ne.s32.totalorder %s66, %s67
    %p79 = scmp.eq.s32.totalorder %s15, 1
    %p80 = por %p78, %p79
    %p82 = scmp.ne.s32.totalorder %s67, %s81
    %p83 = scmp.eq.s32.totalorder %s15, 0
    %p84 = por %p82, %p83
    %s85 = ssub.s32 %s9, %s16
    %p86 = scmp.eq.s32.totalorder %s85, 0
    %s88 = sadd.s32 %s87, 1
    %s89 = scalar_select %p86, %s87, %s88
    %p92 = pneg %p86
    %p93 = scmp.eq.s32.totalorder %s9, 1
    %p94 = por %p92, %p93
    %p95 = scmp.ne.s32.totalorder %s87, %s90
    %p96 = scmp.eq.s32.totalorder %s9, 0
    %p97 = por %p95, %p96
    %p98 = scmp.ne.s32.totalorder %s87, %s90
    %p99 = scmp.eq.s32.totalorder %s14, 1
    %p100 = por %p98, %p99
    %p101 = scmp.ne.s32.totalorder %s90, %s91
    %p102 = scmp.eq.s32.totalorder %s14, 0
    %p103 = por %p101, %p102
    %p104 = scmp.ne.s32.totalorder %s90, %s91
    %p105 = scmp.eq.s32.totalorder %s15, 1
    %p106 = por %p104, %p105
    %p108 = scmp.ne.s32.totalorder %s91, %s107
    %p109 = scmp.eq.s32.totalorder %s15, 0
    %p110 = por %p108, %p109
    %p111 = scmp.le.s32.totalorder 1, %s9
    %p112 = scmp.lt.s32.totalorder %s9, 3
    %p113 = pnand %p111, %p112
    %p114 = pneg %p113
    // Predicated region
    $region9: #{_up_conv_impl.3} parent=5 // pred_check
      _
    $region10: #{_up_conv_impl.3} parent=5 // pred_check_branch
      %116 = sbr.rel (%p113) target = $region12
    $region11: #{_up_conv_impl.3} parent=5 // pred_region
      %s117 = ssub.s32 %s9, 1
      // Predicated region
      $region13: #{_up_conv_impl.3} parent=11 // pred_check
        %p118 = pneg %p56
      $region14: #{_up_conv_impl.3} parent=11 // pred_check_branch
        %120 = sbr.rel (%p118) target = $region16
      $region15: #{_up_conv_impl.3} parent=11 // pred_region
        _
      $region16: #{_up_conv_impl.3} parent=11 // pred_fallthru
        _
      // Predicated region
      $region17: #{_up_conv_impl.3} parent=11 // pred_check
        %p121 = pneg %p77
      $region18: #{_up_conv_impl.3} parent=11 // pred_check_branch
        %123 = sbr.rel (%p121) target = $region20
      $region19: #{_up_conv_impl.3} parent=11 // pred_region
        _
      $region20: #{_up_conv_impl.3} parent=11 // pred_fallthru
        _
    $region12: #{_up_conv_impl.3} parent=5 // pred_fallthru
      _
    %p124 = scmp.lt.s32.totalorder %s9, 2
    // Predicated region
    $region21: #{_up_conv_impl.3} parent=5 // pred_check
      %p125 = pneg %p124
    $region22: #{_up_conv_impl.3} parent=5 // pred_check_branch
      %127 = sbr.rel (%p125) target = $region24
    $region23: #{_up_conv_impl.3} parent=5 // pred_region
      // Predicated region
      $region25: #{_up_conv_impl.3} parent=23 // pred_check
        %p128 = pneg %p29
      $region26: #{_up_conv_impl.3} parent=23 // pred_check_branch
        %130 = sbr.rel (%p128) target = $region28
      $region27: #{_up_conv_impl.3} parent=23 // pred_region
        %p131 = scmp.lt.s32.totalorder %s9, 1
        %s132 = scalar_select %p131, %s9, 1
        %s133 = smul.addr %s132, 3
        %s134 = smul.addr %s133, 8
        %s135 = scalar_lea.vmem %s0, %s134
      $region28: #{_up_conv_impl.3} parent=23 // pred_fallthru
        _
    $region24: #{_up_conv_impl.3} parent=5 // pred_fallthru
      _
    %p136 = scmp.le.s32.totalorder 1, %s9
    %p137 = scmp.lt.s32.totalorder %s9, 3
    %p138 = pnand %p136, %p137
    %p139 = pneg %p138
    // Predicated region
    $region29: #{_up_conv_impl.3} parent=5 // pred_check
      _
    $region30: #{_up_conv_impl.3} parent=5 // pred_check_branch
      %141 = sbr.rel (%p138) target = $region32
    $region31: #{_up_conv_impl.3} parent=5 // pred_region
      %s142 = ssub.s32 %s9, 1
      %p143 = scmp.lt.s32.totalorder %s14, 1
      %s144 = scalar_select %p143, %s14, 1
      %s145 = smul.addr %s144, 3
      %s146 = smul.addr %s145, 8
      %s147 = scalar_lea.vmem %s0, %s146
      %p148 = pneg %p35
      %p149 = pneg %p32
      %p150 = pneg %p56
      %p151 = pneg %p53
      %p152 = pneg %p77
      %p153 = pneg %p74
      %p154 = pneg %p103
      %p155 = pneg %p100
      %p156 = scmp.lt.s32.totalorder %s14, 1
      %s157 = scalar_select %p156, %s14, 1
      %s158 = smul.addr %s157, 3
      %s159 = smul.addr %s158, 8
      %s160 = scalar_lea.vmem %s3, %s159
      %p161 = scmp.lt.s32.totalorder %s14, 1
      %s162 = scalar_select %p161, %s14, 1
      %s163 = smul.addr %s162, 3
      %s164 = smul.addr %s163, 8
      %s165 = scalar_lea.vmem %s0, %s164
      %p166 = scmp.lt.s32.totalorder %s14, 1
      %s167 = scalar_select %p166, %s14, 1
      %s168 = smul.addr %s167, 3
      %s169 = smul.addr %s168, 8
      %s170 = scalar_lea.vmem %s3, %s169
      %v171 = vld [vmem:[%s165] sm:$0xff]
      %v172 = vld [vmem:[%s165 + $0x8] sm:$0xff]
      %v173 = vld [vmem:[%s165 + $0x10] sm:$0xff]
      %v174 = vld [vmem:[%s1] sm:$0xff]
      %176 = vset.pattern.permute.xlu0 0
      %177 = vperm.xlu0 %176, %v174
      %v178 = vpop.permute.xlu0 %177
      %v180 = vmul.f32 %v171, %v178
      %v181 = vmul.f32 %v172, %v178
      %v182 = vmul.f32 %v173, %v178
      %v183 = vld [vmem:[%s2] sm:$0xff]
      %185 = vset.pattern.permute.xlu0 0
      %186 = vperm.xlu0 %185, %v183
      %v187 = vpop.permute.xlu0 %186
      %v189 = vadd.f32 %v180, %v187
      %v190 = vadd.f32 %v181, %v187
      %v191 = vadd.f32 %v182, %v187
      %v192 = vmax.f32 %v189, 0.0
      %v193 = vmax.f32 %v190, 0.0
      %v194 = vmax.f32 %v191, 0.0
      %195 = vst [vmem:[%s170] sm:$0xff] %v192
      %196 = vst [vmem:[%s170 + $0x8] sm:$0xff] %v193
      %vm197 = vcmask 261120
      %198 = vst.msk [vmem:[%s170 + $0x10] sm:$0xff] %vm197, %v194
      %p199 = scmp.lt.s32.totalorder %s14, 1
      %s200 = scalar_select %p199, %s14, 1
      %s201 = smul.addr %s200, 3
      %s202 = smul.addr %s201, 8
      %s203 = scalar_lea.vmem %s3, %s202
      // Predicated region
      $region33: #{_up_conv_impl.3} parent=31 // pred_check
        %p204 = pneg %p100
      $region34: #{_up_conv_impl.3} parent=31 // pred_check_branch
        %206 = sbr.rel (%p204) target = $region36
      $region35: #{_up_conv_impl.3} parent=31 // pred_region
        _
      $region36: #{_up_conv_impl.3} parent=31 // pred_fallthru
        _
    $region32: #{_up_conv_impl.3} parent=5 // pred_fallthru
      _
    %p207 = scmp.le.s32.totalorder 2, %s9
    // Predicated region
    $region37: #{_up_conv_impl.3} parent=5 // pred_check
      %p208 = pneg %p207
    $region38: #{_up_conv_impl.3} parent=5 // pred_check_branch
      %210 = sbr.rel (%p208) target = $region40
    $region39: #{_up_conv_impl.3} parent=5 // pred_region
      %s211 = ssub.s32 %s9, 2
      // Predicated region
      $region41: #{_up_conv_impl.3} parent=39 // pred_check
        %p212 = pneg %p106
      $region42: #{_up_conv_impl.3} parent=39 // pred_check_branch
        %214 = sbr.rel (%p212) target = $region44
      $region43: #{_up_conv_impl.3} parent=39 // pred_region
        %p215 = scmp.lt.s32.totalorder %s15, 1
        %s216 = scalar_select %p215, %s15, 1
        %s217 = smul.addr %s216, 3
        %s218 = smul.addr %s217, 8
        %s219 = scalar_lea.vmem %s3, %s218
      $region44: #{_up_conv_impl.3} parent=39 // pred_fallthru
        _
    $region40: #{_up_conv_impl.3} parent=5 // pred_fallthru
      _
  $region6: #{_up_conv_impl.3} parent=0 // loop_footer
    %s13 = sadd.s32 1, %s9
  $region7: #{_up_conv_impl.3} parent=0 // loop_footer_branch
    %8 = sbr.rel target = $region3
  $region8: #{_up_conv_impl.3} parent=0 // loop_exit
    _

// kernel: _up_conv_impl.2
$region0: #{_up_conv_impl.2}
  #allocation0 [shape = 'u32[]', space=smem, size = 0x4, offset = 0x4, fixed_abs, tag = 'smem constant byte address 0x4 - core index']
  #allocation1 [shape = 'u32[144,128]{1,0:T(1,128)}', space=vmem, size = 0x12000, scoped, tag = 'internal scratch']
  %s0 = inlined_call_operand.vmem [shape: f32[2,4,64], index: 0, kind: input, shape index: {}]
  %s1 = inlined_call_operand.vmem [shape: f32[64,342], index: 1, kind: input, shape index: {}]
  %s2 = inlined_call_operand.vmem [shape: f32[9,8,4], index: 2, kind: input, shape index: {}]
  %s3 = inlined_call_operand.vmem [shape: f32[1,288], index: 3, kind: input, shape index: {}]
  %s4 = inlined_call_operand.vmem [shape: f32[2,8,288], index: 4, kind: output, shape index: {0}]
  %s5 = inlined_call_operand.vmem [shape: f32[2,8,1], index: 5, kind: output, shape index: {1}]
  %s6 = inlined_call_operand.vmem [shape: f32[2,8,1], index: 6, kind: output, shape index: {2}]
  %7 = xla_tuple %s4, %s5, %s6
  %s8 = sld [smem:[#allocation0]]
  $region65: #{_up_conv_impl.2} parent=0
    _
  %s10 = ssub.s32 1, %s8
  %s11 = scalar_select 0, %s10, %s8
  loop: start=0, step=1, limit=4
  $region2: #{_up_conv_impl.2} parent=0 // loop_pre_header
    _
  $region3: #{_up_conv_impl.2} parent=0 // loop_header
    %s13 = sphi 0, %s17
    %p14 = scmp.ge.s32.totalorder %s13, 4
    %s23 = sphi 0, %s25
    %s26 = sphi 0, %s23
    %s27 = sphi 0, %s26
    %s43 = sphi 0, %s27
    %s47 = sphi 0, %s47
    %s49 = sphi 0, %s47
    %s50 = sphi 0, %s49
    %s64 = sphi 0, %s50
    %s68 = sphi 0, %s68
    %s70 = sphi 0, %s68
    %s71 = sphi 0, %s70
    %s85 = sphi 0, %s71
    %s89 = sphi 0, %s89
    %s91 = sphi 0, %s89
    %s92 = sphi 0, %s91
    %s106 = sphi 0, %s92
    %s112 = sphi 0, %s114
    %s115 = sphi 0, %s112
    %s116 = sphi 0, %s115
    %s132 = sphi 0, %s116
    %s138 = sphi 0, %s140
    %s141 = sphi 0, %s138
    %s142 = sphi 0, %s141
    %s158 = sphi 0, %s142
    %s164 = sphi 0, %s166
    %s167 = sphi 0, %s164
    %s168 = sphi 0, %s167
    %s184 = sphi 0, %s168
  $region4: #{_up_conv_impl.2} parent=0 // loop_header_branch
    %16 = sbr.rel (%p14) target = $region8
  $region5: #{_up_conv_impl.2} parent=0 // loop_body
    %s18 = ssub.s32 %s13, 1
    %s19 = ssub.s32 %s13, 2
    %s20 = sadd.s32 %s13, 1
    %s21 = ssub.s32 %s13, %s20
    %p22 = scmp.eq.s32.totalorder %s21, 0
    %s24 = sadd.s32 %s23, 1
    %s25 = scalar_select %p22, %s23, %s24
    %p28 = pneg %p22
    %p29 = scmp.eq.s32.totalorder %s13, 1
    %p30 = por %p28, %p29
    %p31 = scmp.ne.s32.totalorder %s23, %s26
    %p32 = scmp.eq.s32.totalorder %s13, 0
    %p33 = por %p31, %p32
    %p34 = scmp.ne.s32.totalorder %s23, %s26
    %p35 = scmp.eq.s32.totalorder %s18, 1
    %p36 = por %p34, %p35
    %p37 = scmp.ne.s32.totalorder %s26, %s27
    %p38 = scmp.eq.s32.totalorder %s18, 0
    %p39 = por %p37, %p38
    %p40 = scmp.ne.s32.totalorder %s26, %s27
    %p41 = scmp.eq.s32.totalorder %s19, 1
    %p42 = por %p40, %p41
    %p44 = scmp.ne.s32.totalorder %s27, %s43
    %p45 = scmp.eq.s32.totalorder %s19, 0
    %p46 = por %p44, %p45
    %s48 = sadd.s32 %s47, 1
    %p51 = scmp.eq.s32.totalorder %s13, 1
    %p52 = scmp.ne.s32.totalorder %s47, %s49
    %p53 = scmp.eq.s32.totalorder %s13, 0
    %p54 = por %p52, %p53
    %p55 = scmp.ne.s32.totalorder %s47, %s49
    %p56 = scmp.eq.s32.totalorder %s18, 1
    %p57 = por %p55, %p56
    %p58 = scmp.ne.s32.totalorder %s49, %s50
    %p59 = scmp.eq.s32.totalorder %s18, 0
    %p60 = por %p58, %p59
    %p61 = scmp.ne.s32.totalorder %s49, %s50
    %p62 = scmp.eq.s32.totalorder %s19, 1
    %p63 = por %p61, %p62
    %p65 = scmp.ne.s32.totalorder %s50, %s64
    %p66 = scmp.eq.s32.totalorder %s19, 0
    %p67 = por %p65, %p66
    %s69 = sadd.s32 %s68, 1
    %p72 = scmp.eq.s32.totalorder %s13, 1
    %p73 = scmp.ne.s32.totalorder %s68, %s70
    %p74 = scmp.eq.s32.totalorder %s13, 0
    %p75 = por %p73, %p74
    %p76 = scmp.ne.s32.totalorder %s68, %s70
    %p77 = scmp.eq.s32.totalorder %s18, 1
    %p78 = por %p76, %p77
    %p79 = scmp.ne.s32.totalorder %s70, %s71
    %p80 = scmp.eq.s32.totalorder %s18, 0
    %p81 = por %p79, %p80
    %p82 = scmp.ne.s32.totalorder %s70, %s71
    %p83 = scmp.eq.s32.totalorder %s19, 1
    %p84 = por %p82, %p83
    %p86 = scmp.ne.s32.totalorder %s71, %s85
    %p87 = scmp.eq.s32.totalorder %s19, 0
    %p88 = por %p86, %p87
    %s90 = sadd.s32 %s89, 1
    %p93 = scmp.eq.s32.totalorder %s13, 1
    %p94 = scmp.ne.s32.totalorder %s89, %s91
    %p95 = scmp.eq.s32.totalorder %s13, 0
    %p96 = por %p94, %p95
    %p97 = scmp.ne.s32.totalorder %s89, %s91
    %p98 = scmp.eq.s32.totalorder %s18, 1
    %p99 = por %p97, %p98
    %p100 = scmp.ne.s32.totalorder %s91, %s92
    %p101 = scmp.eq.s32.totalorder %s18, 0
    %p102 = por %p100, %p101
    %p103 = scmp.ne.s32.totalorder %s91, %s92
    %p104 = scmp.eq.s32.totalorder %s19, 1
    %p105 = por %p103, %p104
    %p107 = scmp.ne.s32.totalorder %s92, %s106
    %p108 = scmp.eq.s32.totalorder %s19, 0
    %p109 = por %p107, %p108
    %s110 = ssub.s32 %s13, %s20
    %p111 = scmp.eq.s32.totalorder %s110, 0
    %s113 = sadd.s32 %s112, 1
    %s114 = scalar_select %p111, %s112, %s113
    %p117 = pneg %p111
    %p118 = scmp.eq.s32.totalorder %s13, 1
    %p119 = por %p117, %p118
    %p120 = scmp.ne.s32.totalorder %s112, %s115
    %p121 = scmp.eq.s32.totalorder %s13, 0
    %p122 = por %p120, %p121
    %p123 = scmp.ne.s32.totalorder %s112, %s115
    %p124 = scmp.eq.s32.totalorder %s18, 1
    %p125 = por %p123, %p124
    %p126 = scmp.ne.s32.totalorder %s115, %s116
    %p127 = scmp.eq.s32.totalorder %s18, 0
    %p128 = por %p126, %p127
    %p129 = scmp.ne.s32.totalorder %s115, %s116
    %p130 = scmp.eq.s32.totalorder %s19, 1
    %p131 = por %p129, %p130
    %p133 = scmp.ne.s32.totalorder %s116, %s132
    %p134 = scmp.eq.s32.totalorder %s19, 0
    %p135 = por %p133, %p134
    %s136 = ssub.s32 %s13, %s20
    %p137 = scmp.eq.s32.totalorder %s136, 0
    %s139 = sadd.s32 %s138, 1
    %s140 = scalar_select %p137, %s138, %s139
    %p143 = pneg %p137
    %p144 = scmp.eq.s32.totalorder %s13, 1
    %p145 = por %p143, %p144
    %p146 = scmp.ne.s32.totalorder %s138, %s141
    %p147 = scmp.eq.s32.totalorder %s13, 0
    %p148 = por %p146, %p147
    %p149 = scmp.ne.s32.totalorder %s138, %s141
    %p150 = scmp.eq.s32.totalorder %s18, 1
    %p151 = por %p149, %p150
    %p152 = scmp.ne.s32.totalorder %s141, %s142
    %p153 = scmp.eq.s32.totalorder %s18, 0
    %p154 = por %p152, %p153
    %p155 = scmp.ne.s32.totalorder %s141, %s142
    %p156 = scmp.eq.s32.totalorder %s19, 1
    %p157 = por %p155, %p156
    %p159 = scmp.ne.s32.totalorder %s142, %s158
    %p160 = scmp.eq.s32.totalorder %s19, 0
    %p161 = por %p159, %p160
    %s162 = ssub.s32 %s13, %s20
    %p163 = scmp.eq.s32.totalorder %s162, 0
    %s165 = sadd.s32 %s164, 1
    %s166 = scalar_select %p163, %s164, %s165
    %p169 = pneg %p163
    %p170 = scmp.eq.s32.totalorder %s13, 1
    %p171 = por %p169, %p170
    %p172 = scmp.ne.s32.totalorder %s164, %s167
    %p173 = scmp.eq.s32.totalorder %s13, 0
    %p174 = por %p172, %p173
    %p175 = scmp.ne.s32.totalorder %s164, %s167
    %p176 = scmp.eq.s32.totalorder %s18, 1
    %p177 = por %p175, %p176
    %p178 = scmp.ne.s32.totalorder %s167, %s168
    %p179 = scmp.eq.s32.totalorder %s18, 0
    %p180 = por %p178, %p179
    %p181 = scmp.ne.s32.totalorder %s167, %s168
    %p182 = scmp.eq.s32.totalorder %s19, 1
    %p183 = por %p181, %p182
    %p185 = scmp.ne.s32.totalorder %s168, %s184
    %p186 = scmp.eq.s32.totalorder %s19, 0
    %p187 = por %p185, %p186
    %p188 = scmp.le.s32.totalorder 1, %s13
    %p189 = scmp.lt.s32.totalorder %s13, 3
    %p190 = pnand %p188, %p189
    %p191 = pneg %p190
    // Predicated region
    $region9: #{_up_conv_impl.2} parent=5 // pred_check
      _
    $region10: #{_up_conv_impl.2} parent=5 // pred_check_branch
      %193 = sbr.rel (%p190) target = $region12
    $region11: #{_up_conv_impl.2} parent=5 // pred_region
      %s194 = ssub.s32 %s13, 1
      // Predicated region
      $region13: #{_up_conv_impl.2} parent=11 // pred_check
        %p195 = pneg %p60
      $region14: #{_up_conv_impl.2} parent=11 // pred_check_branch
        %197 = sbr.rel (%p195) target = $region16
      $region15: #{_up_conv_impl.2} parent=11 // pred_region
        _
      $region16: #{_up_conv_impl.2} parent=11 // pred_fallthru
        _
      // Predicated region
      $region17: #{_up_conv_impl.2} parent=11 // pred_check
        %p198 = pneg %p81
      $region18: #{_up_conv_impl.2} parent=11 // pred_check_branch
        %200 = sbr.rel (%p198) target = $region20
      $region19: #{_up_conv_impl.2} parent=11 // pred_region
        _
      $region20: #{_up_conv_impl.2} parent=11 // pred_fallthru
        _
      // Predicated region
      $region21: #{_up_conv_impl.2} parent=11 // pred_check
        %p201 = pneg %p102
      $region22: #{_up_conv_impl.2} parent=11 // pred_check_branch
        %203 = sbr.rel (%p201) target = $region24
      $region23: #{_up_conv_impl.2} parent=11 // pred_region
        _
      $region24: #{_up_conv_impl.2} parent=11 // pred_fallthru
        _
    $region12: #{_up_conv_impl.2} parent=5 // pred_fallthru
      _
    %p204 = scmp.lt.s32.totalorder %s13, 2
    // Predicated region
    $region25: #{_up_conv_impl.2} parent=5 // pred_check
      %p205 = pneg %p204
    $region26: #{_up_conv_impl.2} parent=5 // pred_check_branch
      %207 = sbr.rel (%p205) target = $region28
    $region27: #{_up_conv_impl.2} parent=5 // pred_region
      // Predicated region
      $region29: #{_up_conv_impl.2} parent=27 // pred_check
        %p208 = pneg %p33
      $region30: #{_up_conv_impl.2} parent=27 // pred_check_branch
        %210 = sbr.rel (%p208) target = $region32
      $region31: #{_up_conv_impl.2} parent=27 // pred_region
        %p211 = scmp.lt.s32.totalorder %s13, 1
        %s212 = scalar_select %p211, %s13, 1
        %s213 = smul.addr %s212, 4
        %s214 = scalar_lea.vmem %s0, %s213
      $region32: #{_up_conv_impl.2} parent=27 // pred_fallthru
        _
    $region28: #{_up_conv_impl.2} parent=5 // pred_fallthru
      _
    %p215 = scmp.le.s32.totalorder 1, %s13
    %p216 = scmp.lt.s32.totalorder %s13, 3
    %p217 = pnand %p215, %p216
    %p218 = pneg %p217
    // Predicated region
    $region33: #{_up_conv_impl.2} parent=5 // pred_check
      _
    $region34: #{_up_conv_impl.2} parent=5 // pred_check_branch
      %220 = sbr.rel (%p217) target = $region36
    $region35: #{_up_conv_impl.2} parent=5 // pred_region
      %s221 = ssub.s32 %s13, 1
      %p222 = scmp.lt.s32.totalorder %s18, 1
      %s223 = scalar_select %p222, %s18, 1
      %s224 = smul.addr %s223, 4
      %s225 = scalar_lea.vmem %s0, %s224
      %p226 = pneg %p39
      %p227 = pneg %p36
      %p228 = pneg %p60
      %p229 = pneg %p57
      %p230 = pneg %p81
      %p231 = pneg %p78
      %p232 = pneg %p102
      %p233 = pneg %p99
      %p234 = pneg %p128
      %p235 = pneg %p125
      %p236 = scmp.lt.s32.totalorder %s18, 1
      %s237 = scalar_select %p236, %s18, 1
      %s238 = smul.addr %s237, 3
      %s239 = smul.addr %s238, 8
      %s240 = scalar_lea.vmem %s4, %s239
      %p241 = pneg %p154
      %p242 = pneg %p151
      %p243 = scmp.lt.s32.totalorder %s18, 1
      %s244 = scalar_select %p243, %s18, 1
      %s245 = smul.addr %s244, 8
      %s246 = scalar_lea.vmem %s5, %s245
      %p247 = pneg %p180
      %p248 = pneg %p177
      %p249 = scmp.lt.s32.totalorder %s18, 1
      %s250 = scalar_select %p249, %s18, 1
      %s251 = smul.addr %s250, 8
      %s252 = scalar_lea.vmem %s6, %s251
      %p253 = scmp.lt.s32.totalorder %s18, 1
      %s254 = scalar_select %p253, %s18, 1
      %s255 = smul.addr %s254, 4
      %s256 = scalar_lea.vmem %s0, %s255
      %p257 = scmp.lt.s32.totalorder %s18, 1
      %s258 = scalar_select %p257, %s18, 1
      %s259 = smul.addr %s258, 3
      %s260 = smul.addr %s259, 8
      %s261 = scalar_lea.vmem %s4, %s260
      %p262 = scmp.lt.s32.totalorder %s18, 1
      %s263 = scalar_select %p262, %s18, 1
      %s264 = smul.addr %s263, 8
      %s265 = scalar_lea.vmem %s5, %s264
      %p266 = scmp.lt.s32.totalorder %s18, 1
      %s267 = scalar_select %p266, %s18, 1
      %s268 = smul.addr %s267, 8
      %s269 = scalar_lea.vmem %s6, %s268
      %v270 = vld [vmem:[%s256] sm:$0xf]
      %v271 = vld [vmem:[%s1] sm:$0xff]
      %v272 = vld [vmem:[%s1 + $0x8] sm:$0xff]
      %v273 = vld [vmem:[%s1 + $0x10] sm:$0xff]
      %v274 = vld [vmem:[%s1 + $0x18] sm:$0xff]
      %v275 = vld [vmem:[%s1 + $0x20] sm:$0xff]
      %v276 = vld [vmem:[%s1 + $0x28] sm:$0xff]
      %v277 = vld [vmem:[%s1 + $0x30] sm:$0xff]
      %v278 = vld [vmem:[%s1 + $0x38] sm:$0xff]
      %v279 = vld [vmem:[%s1 + $0x40] sm:$0xff]
      %v280 = vld [vmem:[%s1 + $0x48] sm:$0xff]
      %v281 = vld [vmem:[%s1 + $0x50] sm:$0xff]
      %v282 = vld [vmem:[%s1 + $0x58] sm:$0xff]
      %v283 = vld [vmem:[%s1 + $0x60] sm:$0xff]
      %v284 = vld [vmem:[%s1 + $0x68] sm:$0xff]
      %v285 = vld [vmem:[%s1 + $0x70] sm:$0xff]
      %v286 = vld [vmem:[%s1 + $0x78] sm:$0xff]
      %v287 = vld [vmem:[%s1 + $0x80] sm:$0xff]
      %v288 = vld [vmem:[%s1 + $0x88] sm:$0xff]
      %v289 = vld [vmem:[%s1 + $0x90] sm:$0xff]
      %v290 = vld [vmem:[%s1 + $0x98] sm:$0xff]
      %v291 = vld [vmem:[%s1 + $0xa0] sm:$0xff]
      %v292 = vld [vmem:[%s1 + $0xa8] sm:$0xff]
      %v293 = vld [vmem:[%s1 + $0xb0] sm:$0xff]
      %v294 = vld [vmem:[%s1 + $0xb8] sm:$0xff]
      %vm295 = vcmask 523264
      %v297 = vsel %vm295, %v270, 0
      %299 = vmatprep.subr.mxu0 %v272
      %300 = vmatpush1.msra.mxu0 %v271
      %301 = vmatprep.subr.mxu0 %v275
      %302 = vmatpush1.msra.mxu0 %v274
      %303 = vmatprep.subr.mxu0 %v278
      %304 = vmatpush1.msra.mxu0 %v277
      %305 = vmatprep.subr.mxu0 %v281
      %306 = vmatpush1.msra.mxu0 %v280
      %307 = vmatprep.subr.mxu0 %v284
      %308 = vmatpush1.msra.mxu0 %v283
      %309 = vmatprep.subr.mxu0 %v287
      %310 = vmatpush1.msra.mxu0 %v286
      %311 = vmatprep.subr.mxu0 %v290
      %312 = vmatpush1.msra.mxu0 %v289
      %313 = vmatprep.subr.mxu0 %v293
      %314 = vmatpush1.msra.mxu0 %v292
      %315 = vmatprep.subr.mxu0 0.0
      %316 = vmatpush1.msra.mxu0 0.0
      %317 = vmatprep.subr.mxu0 0.0
      %318 = vmatpush1.msra.mxu0 0.0
      %319 = vmatprep.subr.mxu0 0.0
      %320 = vmatpush1.msra.mxu0 0.0
      %321 = vmatprep.subr.mxu0 0.0
      %322 = vmatpush1.msra.mxu0 0.0
      %323 = vmatprep.subr.mxu0 0.0
      %324 = vmatpush1.msra.mxu0 0.0
      %325 = vmatprep.subr.mxu0 0.0
      %326 = vmatpush1.msra.mxu0 0.0
      %327 = vmatprep.subr.mxu0 0.0
      %328 = vmatpush1.msra.mxu0 0.0
      %329 = vmatprep.subr.mxu0 0.0
      %330 = vmatpush1.msra.mxu0 0.0
      %331 = vmatprep.subr.mxu0 0.0
      %332 = vmatpush1.msra.mxu0 0.0
      %333 = vmatprep.subr.mxu0 0.0
      %334 = vmatpush1.msra.mxu0 0.0
      %335 = vmatprep.subr.mxu0 0.0
      %336 = vmatpush1.msra.mxu0 0.0
      %337 = vmatprep.subr.mxu0 0.0
      %338 = vmatpush1.msra.mxu0 0.0
      %339 = vmatprep.subr.mxu0 0.0
      %340 = vmatpush1.msra.mxu0 0.0
      %341 = vmatprep.subr.mxu0 0.0
      %342 = vmatpush1.msra.mxu0 0.0
      %343 = vmatprep.subr.mxu0 0.0
      %344 = vmatpush1.msra.mxu0 0.0
      %345 = vmatprep.subr.mxu0 0.0
      %346 = vmatpush1.msra.mxu0 0.0
      %347 = vmatprep.subr.mxu0 0.0
      %348 = vmatpush1.msra.mxu0 0.0
      %349 = vmatprep.subr.mxu0 0.0
      %350 = vmatpush1.msra.mxu0 0.0
      %351 = vmatprep.subr.mxu0 0.0
      %352 = vmatpush1.msra.mxu0 0.0
      %353 = vmatprep.subr.mxu0 0.0
      %354 = vmatpush1.msra.mxu0 0.0
      %355 = vmatprep.subr.mxu0 0.0
      %356 = vmatpush1.msra.mxu0 0.0
      %357 = vmatprep.subr.mxu0 0.0
      %358 = vmatpush1.msra.mxu0 0.0
      %359 = vmatprep.subr.mxu0 0.0
      %360 = vmatpush1.msra.mxu0 0.0
      %361 = vmatprep.subr.mxu0 0.0
      %362 = vmatpush1.msra.mxu0 0.0
      %363 = vmatprep.mubr.f32.mxu0 0.0
      %364 = vmatmul.mubr.f32.gmra.mrb[0].mxu0 %v297
      %v365 = vpop.f32.mrb[0].mxu0
      %v366 = vadd.f32 0.0, %v365
      %v367 = vpop.f32.mrb[0].mxu0
      %v368 = vadd.f32 0.0, %v367
      %369 = vdwg.mxu0
      %370 = vmatprep.subr.mxu0 0.0
      %371 = vmatpush1.msra.mxu0 %v273
      %372 = vmatprep.subr.mxu0 0.0
      %373 = vmatpush1.msra.mxu0 %v276
      %374 = vmatprep.subr.mxu0 0.0
      %375 = vmatpush1.msra.mxu0 %v279
      %376 = vmatprep.subr.mxu0 0.0
      %377 = vmatpush1.msra.mxu0 %v282
      %378 = vmatprep.subr.mxu0 0.0
      %379 = vmatpush1.msra.mxu0 %v285
      %380 = vmatprep.subr.mxu0 0.0
      %381 = vmatpush1.msra.mxu0 %v288
      %382 = vmatprep.subr.mxu0 0.0
      %383 = vmatpush1.msra.mxu0 %v291
      %384 = vmatprep.subr.mxu0 0.0
      %385 = vmatpush1.msra.mxu0 %v294
      %386 = vmatprep.subr.mxu0 0.0
      %387 = vmatpush1.msra.mxu0 0.0
      %388 = vmatprep.subr.mxu0 0.0
      %389 = vmatpush1.msra.mxu0 0.0
      %390 = vmatprep.subr.mxu0 0.0
      %391 = vmatpush1.msra.mxu0 0.0
      %392 = vmatprep.subr.mxu0 0.0
      %393 = vmatpush1.msra.mxu0 0.0
      %394 = vmatprep.subr.mxu0 0.0
      %395 = vmatpush1.msra.mxu0 0.0
      %396 = vmatprep.subr.mxu0 0.0
      %397 = vmatpush1.msra.mxu0 0.0
      %398 = vmatprep.subr.mxu0 0.0
      %399 = vmatpush1.msra.mxu0 0.0
      %400 = vmatprep.subr.mxu0 0.0
      %401 = vmatpush1.msra.mxu0 0.0
      %402 = vmatprep.subr.mxu0 0.0
      %403 = vmatpush1.msra.mxu0 0.0
      %404 = vmatprep.subr.mxu0 0.0
      %405 = vmatpush1.msra.mxu0 0.0
      %406 = vmatprep.subr.mxu0 0.0
      %407 = vmatpush1.msra.mxu0 0.0
      %408 = vmatprep.subr.mxu0 0.0
      %409 = vmatpush1.msra.mxu0 0.0
      %410 = vmatprep.subr.mxu0 0.0
      %411 = vmatpush1.msra.mxu0 0.0
      %412 = vmatprep.subr.mxu0 0.0
      %413 = vmatpush1.msra.mxu0 0.0
      %414 = vmatprep.subr.mxu0 0.0
      %415 = vmatpush1.msra.mxu0 0.0
      %416 = vmatprep.subr.mxu0 0.0
      %417 = vmatpush1.msra.mxu0 0.0
      %418 = vmatprep.subr.mxu0 0.0
      %419 = vmatpush1.msra.mxu0 0.0
      %420 = vmatprep.subr.mxu0 0.0
      %421 = vmatpush1.msra.mxu0 0.0
      %422 = vmatprep.subr.mxu0 0.0
      %423 = vmatpush1.msra.mxu0 0.0
      %424 = vmatprep.subr.mxu0 0.0
      %425 = vmatpush1.msra.mxu0 0.0
      %426 = vmatprep.subr.mxu0 0.0
      %427 = vmatpush1.msra.mxu0 0.0
      %428 = vmatprep.subr.mxu0 0.0
      %429 = vmatpush1.msra.mxu0 0.0
      %430 = vmatprep.subr.mxu0 0.0
      %431 = vmatpush1.msra.mxu0 0.0
      %432 = vmatprep.subr.mxu0 0.0
      %433 = vmatpush1.msra.mxu0 0.0
      %434 = vmatprep.mubr.f32.mxu0 0.0
      %435 = vmatmul.mubr.f32.gmra.mrb[0].mxu0 %v297
      %v436 = vpop.f32.mrb[0].mxu0
      %v437 = vadd.f32 0.0, %v436
      %v438 = vpop.f32.mrb[0].mxu0
      %439 = vdwg.mxu0
      %v440 = vld [vmem:[%s2] sm:$0xff]
      %s441 = scalar_lea.vmem %s2, 8
      %v442 = vld [vmem:[%s441] sm:$0xff]
      %446 = vrot.lane.b32.xlu0 %v366, 127
      %v447 = vpop.permute.xlu0 %446
      %448 = vrot.lane.b32.xlu0 %v368, 127
      %v449 = vpop.permute.xlu0 %448
      %450 = vrot.lane.b32.xlu0 %v437, 127
      %v451 = vpop.permute.xlu0 %450
      %vm452 = vcmask 1039360
      %v453 = vsel %vm452, %v447, %v449
      %v454 = vsel %vm452, %v449, %v451
      %vm455 = vcmask 31744
      %v457 = vsel %vm455, %v442, 0
      %vm459 = vcmask 1043456
      %v460 = vsel %vm459, %v453, 0
      %v462 = vsel %vm459, %v454, 0
      %v464 = vsel %vm459, %v451, 0
      %466 = vmatprep.subr.mxu0 %v462
      %467 = vmatpush1.msra.mxu0 %v460
      %468 = vmatprep.subr.mxu0 0.0
      %469 = vmatpush1.msra.mxu0 0.0
      %470 = vmatprep.subr.mxu0 0.0
      %471 = vmatpush1.msra.mxu0 0.0
      %472 = vmatprep.subr.mxu0 0.0
      %473 = vmatpush1.msra.mxu0 0.0
      %474 = vmatprep.subr.mxu0 0.0
      %475 = vmatpush1.msra.mxu0 0.0
      %476 = vmatprep.subr.mxu0 0.0
      %477 = vmatpush1.msra.mxu0 0.0
      %478 = vmatprep.subr.mxu0 0.0
      %479 = vmatpush1.msra.mxu0 0.0
      %480 = vmatprep.subr.mxu0 0.0
      %481 = vmatpush1.msra.mxu0 0.0
      %482 = vmatprep.subr.mxu0 0.0
      %483 = vmatpush1.msra.mxu0 0.0
      %484 = vmatprep.subr.mxu0 0.0
      %485 = vmatpush1.msra.mxu0 0.0
      %486 = vmatprep.subr.mxu0 0.0
      %487 = vmatpush1.msra.mxu0 0.0
      %488 = vmatprep.subr.mxu0 0.0
      %489 = vmatpush1.msra.mxu0 0.0
      %490 = vmatprep.subr.mxu0 0.0
      %491 = vmatpush1.msra.mxu0 0.0
      %492 = vmatprep.subr.mxu0 0.0
      %493 = vmatpush1.msra.mxu0 0.0
      %494 = vmatprep.subr.mxu0 0.0
      %495 = vmatpush1.msra.mxu0 0.0
      %496 = vmatprep.subr.mxu0 0.0
      %497 = vmatpush1.msra.mxu0 0.0
      %498 = vmatprep.subr.mxu0 0.0
      %499 = vmatpush1.msra.mxu0 0.0
      %500 = vmatprep.subr.mxu0 0.0
      %501 = vmatpush1.msra.mxu0 0.0
      %502 = vmatprep.subr.mxu0 0.0
      %503 = vmatpush1.msra.mxu0 0.0
      %504 = vmatprep.subr.mxu0 0.0
      %505 = vmatpush1.msra.mxu0 0.0
      %506 = vmatprep.subr.mxu0 0.0
      %507 = vmatpush1.msra.mxu0 0.0
      %508 = vmatprep.subr.mxu0 0.0
      %509 = vmatpush1.msra.mxu0 0.0
      %510 = vmatprep.subr.mxu0 0.0
      %511 = vmatpush1.msra.mxu0 0.0
      %512 = vmatprep.subr.mxu0 0.0
      %513 = vmatpush1.msra.mxu0 0.0
      %514 = vmatprep.subr.mxu0 0.0
      %515 = vmatpush1.msra.mxu0 0.0
      %516 = vmatprep.subr.mxu0 0.0
      %517 = vmatpush1.msra.mxu0 0.0
      %518 = vmatprep.subr.mxu0 0.0
      %519 = vmatpush1.msra.mxu0 0.0
      %520 = vmatprep.subr.mxu0 0.0
      %521 = vmatpush1.msra.mxu0 0.0
      %522 = vmatprep.subr.mxu0 0.0
      %523 = vmatpush1.msra.mxu0 0.0
      %524 = vmatprep.subr.mxu0 0.0
      %525 = vmatpush1.msra.mxu0 0.0
      %526 = vmatprep.subr.mxu0 0.0
      %527 = vmatpush1.msra.mxu0 0.0
      %528 = vmatprep.subr.mxu0 0.0
      %529 = vmatpush1.msra.mxu0 0.0
      %530 = vmatprep.mubr.f32.mxu0 0.0
      %531 = vmatmul.mubr.f32.gmra.mrb[0].mxu0 %v457
      %v532 = vpop.f32.mrb[0].mxu0
      %v533 = vadd.f32 0.0, %v532
      %v534 = vpop.f32.mrb[0].mxu0
      %v535 = vadd.f32 0.0, %v534
      %536 = vdwg.mxu0
      %537 = vmatprep.subr.mxu0 0.0
      %538 = vmatpush1.msra.mxu0 %v464
      %539 = vmatprep.subr.mxu0 0.0
      %540 = vmatpush1.msra.mxu0 0.0
      %541 = vmatprep.subr.mxu0 0.0
      %542 = vmatpush1.msra.mxu0 0.0
      %543 = vmatprep.subr.mxu0 0.0
      %544 = vmatpush1.msra.mxu0 0.0
      %545 = vmatprep.subr.mxu0 0.0
      %546 = vmatpush1.msra.mxu0 0.0
      %547 = vmatprep.subr.mxu0 0.0
      %548 = vmatpush1.msra.mxu0 0.0
      %549 = vmatprep.subr.mxu0 0.0
      %550 = vmatpush1.msra.mxu0 0.0
      %551 = vmatprep.subr.mxu0 0.0
      %552 = vmatpush1.msra.mxu0 0.0
      %553 = vmatprep.subr.mxu0 0.0
      %554 = vmatpush1.msra.mxu0 0.0
      %555 = vmatprep.subr.mxu0 0.0
      %556 = vmatpush1.msra.mxu0 0.0
      %557 = vmatprep.subr.mxu0 0.0
      %558 = vmatpush1.msra.mxu0 0.0
      %559 = vmatprep.subr.mxu0 0.0
      %560 = vmatpush1.msra.mxu0 0.0
      %561 = vmatprep.subr.mxu0 0.0
      %562 = vmatpush1.msra.mxu0 0.0
      %563 = vmatprep.subr.mxu0 0.0
      %564 = vmatpush1.msra.mxu0 0.0
      %565 = vmatprep.subr.mxu0 0.0
      %566 = vmatpush1.msra.mxu0 0.0
      %567 = vmatprep.subr.mxu0 0.0
      %568 = vmatpush1.msra.mxu0 0.0
      %569 = vmatprep.subr.mxu0 0.0
      %570 = vmatpush1.msra.mxu0 0.0
      %571 = vmatprep.subr.mxu0 0.0
      %572 = vmatpush1.msra.mxu0 0.0
      %573 = vmatprep.subr.mxu0 0.0
      %574 = vmatpush1.msra.mxu0 0.0
      %575 = vmatprep.subr.mxu0 0.0
      %576 = vmatpush1.msra.mxu0 0.0
      %577 = vmatprep.subr.mxu0 0.0
      %578 = vmatpush1.msra.mxu0 0.0
      %579 = vmatprep.subr.mxu0 0.0
      %580 = vmatpush1.msra.mxu0 0.0
      %581 = vmatprep.subr.mxu0 0.0
      %582 = vmatpush1.msra.mxu0 0.0
      %583 = vmatprep.subr.mxu0 0.0
      %584 = vmatpush1.msra.mxu0 0.0
      %585 = vmatprep.subr.mxu0 0.0
      %586 = vmatpush1.msra.mxu0 0.0
      %587 = vmatprep.subr.mxu0 0.0
      %588 = vmatpush1.msra.mxu0 0.0
      %589 = vmatprep.subr.mxu0 0.0
      %590 = vmatpush1.msra.mxu0 0.0
      %591 = vmatprep.subr.mxu0 0.0
      %592 = vmatpush1.msra.mxu0 0.0
      %593 = vmatprep.subr.mxu0 0.0
      %594 = vmatpush1.msra.mxu0 0.0
      %595 = vmatprep.subr.mxu0 0.0
      %596 = vmatpush1.msra.mxu0 0.0
      %597 = vmatprep.subr.mxu0 0.0
      %598 = vmatpush1.msra.mxu0 0.0
      %599 = vmatprep.subr.mxu0 0.0
      %600 = vmatpush1.msra.mxu0 0.0
      %601 = vmatprep.mubr.f32.mxu0 0.0
      %602 = vmatmul.mubr.f32.gmra.mrb[0].mxu0 %v457
      %v603 = vpop.f32.mrb[0].mxu0
      %v604 = vadd.f32 0.0, %v603
      %v605 = vpop.f32.mrb[0].mxu0
      %606 = vdwg.mxu0
      %v608 = vsel %vm455, %v440, 0
      %v610 = vsel %vm459, %v366, 0
      %v612 = vsel %vm459, %v368, 0
      %v614 = vsel %vm459, %v437, 0
      %616 = vmatprep.subr.mxu0 %v612
      %617 = vmatpush1.msra.mxu0 %v610
      %618 = vmatprep.subr.mxu0 0.0
      %619 = vmatpush1.msra.mxu0 0.0
      %620 = vmatprep.subr.mxu0 0.0
      %621 = vmatpush1.msra.mxu0 0.0
      %622 = vmatprep.subr.mxu0 0.0
      %623 = vmatpush1.msra.mxu0 0.0
      %624 = vmatprep.subr.mxu0 0.0
      %625 = vmatpush1.msra.mxu0 0.0
      %626 = vmatprep.subr.mxu0 0.0
      %627 = vmatpush1.msra.mxu0 0.0
      %628 = vmatprep.subr.mxu0 0.0
      %629 = vmatpush1.msra.mxu0 0.0
      %630 = vmatprep.subr.mxu0 0.0
      %631 = vmatpush1.msra.mxu0 0.0
      %632 = vmatprep.subr.mxu0 0.0
      %633 = vmatpush1.msra.mxu0 0.0
      %634 = vmatprep.subr.mxu0 0.0
      %635 = vmatpush1.msra.mxu0 0.0
      %636 = vmatprep.subr.mxu0 0.0
      %637 = vmatpush1.msra.mxu0 0.0
      %638 = vmatprep.subr.mxu0 0.0
      %639 = vmatpush1.msra.mxu0 0.0
      %640 = vmatprep.subr.mxu0 0.0
      %641 = vmatpush1.msra.mxu0 0.0
      %642 = vmatprep.subr.mxu0 0.0
      %643 = vmatpush1.msra.mxu0 0.0
      %644 = vmatprep.subr.mxu0 0.0
      %645 = vmatpush1.msra.mxu0 0.0
      %646 = vmatprep.subr.mxu0 0.0
      %647 = vmatpush1.msra.mxu0 0.0
      %648 = vmatprep.subr.mxu0 0.0
      %649 = vmatpush1.msra.mxu0 0.0
      %650 = vmatprep.subr.mxu0 0.0
      %651 = vmatpush1.msra.mxu0 0.0
      %652 = vmatprep.subr.mxu0 0.0
      %653 = vmatpush1.msra.mxu0 0.0
      %654 = vmatprep.subr.mxu0 0.0
      %655 = vmatpush1.msra.mxu0 0.0
      %656 = vmatprep.subr.mxu0 0.0
      %657 = vmatpush1.msra.mxu0 0.0
      %658 = vmatprep.subr.mxu0 0.0
      %659 = vmatpush1.msra.mxu0 0.0
      %660 = vmatprep.subr.mxu0 0.0
      %661 = vmatpush1.msra.mxu0 0.0
      %662 = vmatprep.subr.mxu0 0.0
      %663 = vmatpush1.msra.mxu0 0.0
      %664 = vmatprep.subr.mxu0 0.0
      %665 = vmatpush1.msra.mxu0 0.0
      %666 = vmatprep.subr.mxu0 0.0
      %667 = vmatpush1.msra.mxu0 0.0
      %668 = vmatprep.subr.mxu0 0.0
      %669 = vmatpush1.msra.mxu0 0.0
      %670 = vmatprep.subr.mxu0 0.0
      %671 = vmatpush1.msra.mxu0 0.0
      %672 = vmatprep.subr.mxu0 0.0
      %673 = vmatpush1.msra.mxu0 0.0
      %674 = vmatprep.subr.mxu0 0.0
      %675 = vmatpush1.msra.mxu0 0.0
      %676 = vmatprep.subr.mxu0 0.0
      %677 = vmatpush1.msra.mxu0 0.0
      %678 = vmatprep.subr.mxu0 0.0
      %679 = vmatpush1.msra.mxu0 0.0
      %680 = vmatprep.mubr.f32.mxu0 0.0
      %681 = vmatmul.mubr.f32.gmra.mrb[0].mxu0 %v608
      %v682 = vpop.f32.mrb[0].mxu0
      %v683 = vadd.f32 %v533, %v682
      %v684 = vpop.f32.mrb[0].mxu0
      %v685 = vadd.f32 %v535, %v684
      %686 = vdwg.mxu0
      %687 = vmatprep.subr.mxu0 0.0
      %688 = vmatpush1.msra.mxu0 %v614
      %689 = vmatprep.subr.mxu0 0.0
      %690 = vmatpush1.msra.mxu0 0.0
      %691 = vmatprep.subr.mxu0 0.0
      %692 = vmatpush1.msra.mxu0 0.0
      %693 = vmatprep.subr.mxu0 0.0
      %694 = vmatpush1.msra.mxu0 0.0
      %695 = vmatprep.subr.mxu0 0.0
      %696 = vmatpush1.msra.mxu0 0.0
      %697 = vmatprep.subr.mxu0 0.0
      %698 = vmatpush1.msra.mxu0 0.0
      %699 = vmatprep.subr.mxu0 0.0
      %700 = vmatpush1.msra.mxu0 0.0
      %701 = vmatprep.subr.mxu0 0.0
      %702 = vmatpush1.msra.mxu0 0.0
      %703 = vmatprep.subr.mxu0 0.0
      %704 = vmatpush1.msra.mxu0 0.0
      %705 = vmatprep.subr.mxu0 0.0
      %706 = vmatpush1.msra.mxu0 0.0
      %707 = vmatprep.subr.mxu0 0.0
      %708 = vmatpush1.msra.mxu0 0.0
      %709 = vmatprep.subr.mxu0 0.0
      %710 = vmatpush1.msra.mxu0 0.0
      %711 = vmatprep.subr.mxu0 0.0
      %712 = vmatpush1.msra.mxu0 0.0
      %713 = vmatprep.subr.mxu0 0.0
      %714 = vmatpush1.msra.mxu0 0.0
      %715 = vmatprep.subr.mxu0 0.0
      %716 = vmatpush1.msra.mxu0 0.0
      %717 = vmatprep.subr.mxu0 0.0
      %718 = vmatpush1.msra.mxu0 0.0
      %719 = vmatprep.subr.mxu0 0.0
      %720 = vmatpush1.msra.mxu0 0.0
      %721 = vmatprep.subr.mxu0 0.0
      %722 = vmatpush1.msra.mxu0 0.0
      %723 = vmatprep.subr.mxu0 0.0
      %724 = vmatpush1.msra.mxu0 0.0
      %725 = vmatprep.subr.mxu0 0.0
      %726 = vmatpush1.msra.mxu0 0.0
      %727 = vmatprep.subr.mxu0 0.0
      %728 = vmatpush1.msra.mxu0 0.0
      %729 = vmatprep.subr.mxu0 0.0
      %730 = vmatpush1.msra.mxu0 0.0
      %731 = vmatprep.subr.mxu0 0.0
      %732 = vmatpush1.msra.mxu0 0.0
      %733 = vmatprep.subr.mxu0 0.0
      %734 = vmatpush1.msra.mxu0 0.0
      %735 = vmatprep.subr.mxu0 0.0
      %736 = vmatpush1.msra.mxu0 0.0
      %737 = vmatprep.subr.mxu0 0.0
      %738 = vmatpush1.msra.mxu0 0.0
      %739 = vmatprep.subr.mxu0 0.0
      %740 = vmatpush1.msra.mxu0 0.0
      %741 = vmatprep.subr.mxu0 0.0
      %742 = vmatpush1.msra.mxu0 0.0
      %743 = vmatprep.subr.mxu0 0.0
      %744 = vmatpush1.msra.mxu0 0.0
      %745 = vmatprep.subr.mxu0 0.0
      %746 = vmatpush1.msra.mxu0 0.0
      %747 = vmatprep.subr.mxu0 0.0
      %748 = vmatpush1.msra.mxu0 0.0
      %749 = vmatprep.subr.mxu0 0.0
      %750 = vmatpush1.msra.mxu0 0.0
      %751 = vmatprep.mubr.f32.mxu0 0.0
      %752 = vmatmul.mubr.f32.gmra.mrb[0].mxu0 %v608
      %v753 = vpop.f32.mrb[0].mxu0
      %v754 = vadd.f32 %v604, %v753
      %v755 = vpop.f32.mrb[0].mxu0
      %756 = vdwg.mxu0
      %s757 = scalar_lea.vmem %s2, 16
      %v758 = vld [vmem:[%s757] sm:$0xff]
      %759 = vrot.lane.b32.xlu0 %v366, 126
      %v760 = vpop.permute.xlu0 %759
      %761 = vrot.lane.b32.xlu0 %v368, 126
      %v762 = vpop.permute.xlu0 %761
      %763 = vrot.lane.b32.xlu0 %v437, 126
      %v764 = vpop.permute.xlu0 %763
      %vm765 = vcmask 1031168
      %v766 = vsel %vm765, %v760, %v762
      %v767 = vsel %vm765, %v762, %v764
      %v769 = vsel %vm455, %v758, 0
      %v771 = vsel %vm459, %v766, 0
      %v773 = vsel %vm459, %v767, 0
      %v775 = vsel %vm459, %v764, 0
      %777 = vmatprep.subr.mxu0 %v773
      %778 = vmatpush1.msra.mxu0 %v771
      %779 = vmatprep.subr.mxu0 0.0
      %780 = vmatpush1.msra.mxu0 0.0
      %781 = vmatprep.subr.mxu0 0.0
      %782 = vmatpush1.msra.mxu0 0.0
      %783 = vmatprep.subr.mxu0 0.0
      %784 = vmatpush1.msra.mxu0 0.0
      %785 = vmatprep.subr.mxu0 0.0
      %786 = vmatpush1.msra.mxu0 0.0
      %787 = vmatprep.subr.mxu0 0.0
      %788 = vmatpush1.msra.mxu0 0.0
      %789 = vmatprep.subr.mxu0 0.0
      %790 = vmatpush1.msra.mxu0 0.0
      %791 = vmatprep.subr.mxu0 0.0
      %792 = vmatpush1.msra.mxu0 0.0
      %793 = vmatprep.subr.mxu0 0.0
      %794 = vmatpush1.msra.mxu0 0.0
      %795 = vmatprep.subr.mxu0 0.0
      %796 = vmatpush1.msra.mxu0 0.0
      %797 = vmatprep.subr.mxu0 0.0
      %798 = vmatpush1.msra.mxu0 0.0
      %799 = vmatprep.subr.mxu0 0.0
      %800 = vmatpush1.msra.mxu0 0.0
      %801 = vmatprep.subr.mxu0 0.0
      %802 = vmatpush1.msra.mxu0 0.0
      %803 = vmatprep.subr.mxu0 0.0
      %804 = vmatpush1.msra.mxu0 0.0
      %805 = vmatprep.subr.mxu0 0.0
      %806 = vmatpush1.msra.mxu0 0.0
      %807 = vmatprep.subr.mxu0 0.0
      %808 = vmatpush1.msra.mxu0 0.0
      %809 = vmatprep.subr.mxu0 0.0
      %810 = vmatpush1.msra.mxu0 0.0
      %811 = vmatprep.subr.mxu0 0.0
      %812 = vmatpush1.msra.mxu0 0.0
      %813 = vmatprep.subr.mxu0 0.0
      %814 = vmatpush1.msra.mxu0 0.0
      %815 = vmatprep.subr.mxu0 0.0
      %816 = vmatpush1.msra.mxu0 0.0
      %817 = vmatprep.subr.mxu0 0.0
      %818 = vmatpush1.msra.mxu0 0.0
      %819 = vmatprep.subr.mxu0 0.0
      %820 = vmatpush1.msra.mxu0 0.0
      %821 = vmatprep.subr.mxu0 0.0
      %822 = vmatpush1.msra.mxu0 0.0
      %823 = vmatprep.subr.mxu0 0.0
      %824 = vmatpush1.msra.mxu0 0.0
      %825 = vmatprep.subr.mxu0 0.0
      %826 = vmatpush1.msra.mxu0 0.0
      %827 = vmatprep.subr.mxu0 0.0
      %828 = vmatpush1.msra.mxu0 0.0
      %829 = vmatprep.subr.mxu0 0.0
      %830 = vmatpush1.msra.mxu0 0.0
      %831 = vmatprep.subr.mxu0 0.0
      %832 = vmatpush1.msra.mxu0 0.0
      %833 = vmatprep.subr.mxu0 0.0
      %834 = vmatpush1.msra.mxu0 0.0
      %835 = vmatprep.subr.mxu0 0.0
      %836 = vmatpush1.msra.mxu0 0.0
      %837 = vmatprep.subr.mxu0 0.0
      %838 = vmatpush1.msra.mxu0 0.0
      %839 = vmatprep.subr.mxu0 0.0
      %840 = vmatpush1.msra.mxu0 0.0
      %841 = vmatprep.mubr.f32.mxu0 0.0
      %842 = vmatmul.mubr.f32.gmra.mrb[0].mxu0 %v769
      %v843 = vpop.f32.mrb[0].mxu0
      %v844 = vadd.f32 0.0, %v843
      %v845 = vpop.f32.mrb[0].mxu0
      %v846 = vadd.f32 0.0, %v845
      %847 = vdwg.mxu0
      %848 = vmatprep.subr.mxu0 0.0
      %849 = vmatpush1.msra.mxu0 %v775
      %850 = vmatprep.subr.mxu0 0.0
      %851 = vmatpush1.msra.mxu0 0.0
      %852 = vmatprep.subr.mxu0 0.0
      %853 = vmatpush1.msra.mxu0 0.0
      %854 = vmatprep.subr.mxu0 0.0
      %855 = vmatpush1.msra.mxu0 0.0
      %856 = vmatprep.subr.mxu0 0.0
      %857 = vmatpush1.msra.mxu0 0.0
      %858 = vmatprep.subr.mxu0 0.0
      %859 = vmatpush1.msra.mxu0 0.0
      %860 = vmatprep.subr.mxu0 0.0
      %861 = vmatpush1.msra.mxu0 0.0
      %862 = vmatprep.subr.mxu0 0.0
      %863 = vmatpush1.msra.mxu0 0.0
      %864 = vmatprep.subr.mxu0 0.0
      %865 = vmatpush1.msra.mxu0 0.0
      %866 = vmatprep.subr.mxu0 0.0
      %867 = vmatpush1.msra.mxu0 0.0
      %868 = vmatprep.subr.mxu0 0.0
      %869 = vmatpush1.msra.mxu0 0.0
      %870 = vmatprep.subr.mxu0 0.0
      %871 = vmatpush1.msra.mxu0 0.0
      %872 = vmatprep.subr.mxu0 0.0
      %873 = vmatpush1.msra.mxu0 0.0
      %874 = vmatprep.subr.mxu0 0.0
      %875 = vmatpush1.msra.mxu0 0.0
      %876 = vmatprep.subr.mxu0 0.0
      %877 = vmatpush1.msra.mxu0 0.0
      %878 = vmatprep.subr.mxu0 0.0
      %879 = vmatpush1.msra.mxu0 0.0
      %880 = vmatprep.subr.mxu0 0.0
      %881 = vmatpush1.msra.mxu0 0.0
      %882 = vmatprep.subr.mxu0 0.0
      %883 = vmatpush1.msra.mxu0 0.0
      %884 = vmatprep.subr.mxu0 0.0
      %885 = vmatpush1.msra.mxu0 0.0
      %886 = vmatprep.subr.mxu0 0.0
      %887 = vmatpush1.msra.mxu0 0.0
      %888 = vmatprep.subr.mxu0 0.0
      %889 = vmatpush1.msra.mxu0 0.0
      %890 = vmatprep.subr.mxu0 0.0
      %891 = vmatpush1.msra.mxu0 0.0
      %892 = vmatprep.subr.mxu0 0.0
      %893 = vmatpush1.msra.mxu0 0.0
      %894 = vmatprep.subr.mxu0 0.0
      %895 = vmatpush1.msra.mxu0 0.0
      %896 = vmatprep.subr.mxu0 0.0
      %897 = vmatpush1.msra.mxu0 0.0
      %898 = vmatprep.subr.mxu0 0.0
      %899 = vmatpush1.msra.mxu0 0.0
      %900 = vmatprep.subr.mxu0 0.0
      %901 = vmatpush1.msra.mxu0 0.0
      %902 = vmatprep.subr.mxu0 0.0
      %903 = vmatpush1.msra.mxu0 0.0
      %904 = vmatprep.subr.mxu0 0.0
      %905 = vmatpush1.msra.mxu0 0.0
      %906 = vmatprep.subr.mxu0 0.0
      %907 = vmatpush1.msra.mxu0 0.0
      %908 = vmatprep.subr.mxu0 0.0
      %909 = vmatpush1.msra.mxu0 0.0
      %910 = vmatprep.subr.mxu0 0.0
      %911 = vmatpush1.msra.mxu0 0.0
      %912 = vmatprep.mubr.f32.mxu0 0.0
      %913 = vmatmul.mubr.f32.gmra.mrb[0].mxu0 %v769
      %v914 = vpop.f32.mrb[0].mxu0
      %v915 = vadd.f32 0.0, %v914
      %v916 = vpop.f32.mrb[0].mxu0
      %917 = vdwg.mxu0
      %v918 = vadd.f32 %v683, %v844
      %v919 = vadd.f32 %v685, %v846
      %v920 = vadd.f32 %v754, %v915
      %s921 = scalar_lea.vmem %s2, 24
      %v922 = vld [vmem:[%s921] sm:$0xff]
      %923 = vrot.lane.b32.xlu0 %v366, 110
      %v924 = vpop.permute.xlu0 %923
      %925 = vrot.lane.b32.xlu0 %v368, 110
      %v926 = vpop.permute.xlu0 %925
      %927 = vrot.lane.b32.xlu0 %v437, 110
      %v928 = vpop.permute.xlu0 %927
      %vm929 = vcmask 900096
      %v930 = vsel %vm929, %v924, %v926
      %v931 = vsel %vm929, %v926, %v928
      %v933 = vsel %vm455, %v922, 0
      %v935 = vsel %vm459, %v930, 0
      %v937 = vsel %vm459, %v931, 0
      %v939 = vsel %vm459, %v928, 0
      %941 = vmatprep.subr.mxu0 %v937
      %942 = vmatpush1.msra.mxu0 %v935
      %943 = vmatprep.subr.mxu0 0.0
      %944 = vmatpush1.msra.mxu0 0.0
      %945 = vmatprep.subr.mxu0 0.0
      %946 = vmatpush1.msra.mxu0 0.0
      %947 = vmatprep.subr.mxu0 0.0
      %948 = vmatpush1.msra.mxu0 0.0
      %949 = vmatprep.subr.mxu0 0.0
      %950 = vmatpush1.msra.mxu0 0.0
      %951 = vmatprep.subr.mxu0 0.0
      %952 = vmatpush1.msra.mxu0 0.0
      %953 = vmatprep.subr.mxu0 0.0
      %954 = vmatpush1.msra.mxu0 0.0
      %955 = vmatprep.subr.mxu0 0.0
      %956 = vmatpush1.msra.mxu0 0.0
      %957 = vmatprep.subr.mxu0 0.0
      %958 = vmatpush1.msra.mxu0 0.0
      %959 = vmatprep.subr.mxu0 0.0
      %960 = vmatpush1.msra.mxu0 0.0
      %961 = vmatprep.subr.mxu0 0.0
      %962 = vmatpush1.msra.mxu0 0.0
      %963 = vmatprep.subr.mxu0 0.0
      %964 = vmatpush1.msra.mxu0 0.0
      %965 = vmatprep.subr.mxu0 0.0
      %966 = vmatpush1.msra.mxu0 0.0
      %967 = vmatprep.subr.mxu0 0.0
      %968 = vmatpush1.msra.mxu0 0.0
      %969 = vmatprep.subr.mxu0 0.0
      %970 = vmatpush1.msra.mxu0 0.0
      %971 = vmatprep.subr.mxu0 0.0
      %972 = vmatpush1.msra.mxu0 0.0
      %973 = vmatprep.subr.mxu0 0.0
      %974 = vmatpush1.msra.mxu0 0.0
      %975 = vmatprep.subr.mxu0 0.0
      %976 = vmatpush1.msra.mxu0 0.0
      %977 = vmatprep.subr.mxu0 0.0
      %978 = vmatpush1.msra.mxu0 0.0
      %979 = vmatprep.subr.mxu0 0.0
      %980 = vmatpush1.msra.mxu0 0.0
      %981 = vmatprep.subr.mxu0 0.0
      %982 = vmatpush1.msra.mxu0 0.0
      %983 = vmatprep.subr.mxu0 0.0
      %984 = vmatpush1.msra.mxu0 0.0
      %985 = vmatprep.subr.mxu0 0.0
      %986 = vmatpush1.msra.mxu0 0.0
      %987 = vmatprep.subr.mxu0 0.0
      %988 = vmatpush1.msra.mxu0 0.0
      %989 = vmatprep.subr.mxu0 0.0
      %990 = vmatpush1.msra.mxu0 0.0
      %991 = vmatprep.subr.mxu0 0.0
      %992 = vmatpush1.msra.mxu0 0.0
      %993 = vmatprep.subr.mxu0 0.0
      %994 = vmatpush1.msra.mxu0 0.0
      %995 = vmatprep.subr.mxu0 0.0
      %996 = vmatpush1.msra.mxu0 0.0
      %997 = vmatprep.subr.mxu0 0.0
      %998 = vmatpush1.msra.mxu0 0.0
      %999 = vmatprep.subr.mxu0 0.0
      %1000 = vmatpush1.msra.mxu0 0.0
      %1001 = vmatprep.subr.mxu0 0.0
      %1002 = vmatpush1.msra.mxu0 0.0
      %1003 = vmatprep.subr.mxu0 0.0
      %1004 = vmatpush1.msra.mxu0 0.0
      %1005 = vmatprep.mubr.f32.mxu0 0.0
      %1006 = vmatmul.mubr.f32.gmra.mrb[0].mxu0 %v933
      %v1007 = vpop.f32.mrb[0].mxu0
      %v1008 = vadd.f32 0.0, %v1007
      %v1009 = vpop.f32.mrb[0].mxu0
      %v1010 = vadd.f32 0.0, %v1009
      %1011 = vdwg.mxu0
      %1012 = vmatprep.subr.mxu0 0.0
      %1013 = vmatpush1.msra.mxu0 %v939
      %1014 = vmatprep.subr.mxu0 0.0
      %1015 = vmatpush1.msra.mxu0 0.0
      %1016 = vmatprep.subr.mxu0 0.0
      %1017 = vmatpush1.msra.mxu0 0.0
      %1018 = vmatprep.subr.mxu0 0.0
      %1019 = vmatpush1.msra.mxu0 0.0
      %1020 = vmatprep.subr.mxu0 0.0
      %1021 = vmatpush1.msra.mxu0 0.0
      %1022 = vmatprep.subr.mxu0 0.0
      %1023 = vmatpush1.msra.mxu0 0.0
      %1024 = vmatprep.subr.mxu0 0.0
      %1025 = vmatpush1.msra.mxu0 0.0
      %1026 = vmatprep.subr.mxu0 0.0
      %1027 = vmatpush1.msra.mxu0 0.0
      %1028 = vmatprep.subr.mxu0 0.0
      %1029 = vmatpush1.msra.mxu0 0.0
      %1030 = vmatprep.subr.mxu0 0.0
      %1031 = vmatpush1.msra.mxu0 0.0
      %1032 = vmatprep.subr.mxu0 0.0
      %1033 = vmatpush1.msra.mxu0 0.0
      %1034 = vmatprep.subr.mxu0 0.0
      %1035 = vmatpush1.msra.mxu0 0.0
      %1036 = vmatprep.subr.mxu0 0.0
      %1037 = vmatpush1.msra.mxu0 0.0
      %1038 = vmatprep.subr.mxu0 0.0
      %1039 = vmatpush1.msra.mxu0 0.0
      %1040 = vmatprep.subr.mxu0 0.0
      %1041 = vmatpush1.msra.mxu0 0.0
      %1042 = vmatprep.subr.mxu0 0.0
      %1043 = vmatpush1.msra.mxu0 0.0
      %1044 = vmatprep.subr.mxu0 0.0
      %1045 = vmatpush1.msra.mxu0 0.0
      %1046 = vmatprep.subr.mxu0 0.0
      %1047 = vmatpush1.msra.mxu0 0.0
      %1048 = vmatprep.subr.mxu0 0.0
      %1049 = vmatpush1.msra.mxu0 0.0
      %1050 = vmatprep.subr.mxu0 0.0
      %1051 = vmatpush1.msra.mxu0 0.0
      %1052 = vmatprep.subr.mxu0 0.0
      %1053 = vmatpush1.msra.mxu0 0.0
      %1054 = vmatprep.subr.mxu0 0.0
      %1055 = vmatpush1.msra.mxu0 0.0
      %1056 = vmatprep.subr.mxu0 0.0
      %1057 = vmatpush1.msra.mxu0 0.0
      %1058 = vmatprep.subr.mxu0 0.0
      %1059 = vmatpush1.msra.mxu0 0.0
      %1060 = vmatprep.subr.mxu0 0.0
      %1061 = vmatpush1.msra.mxu0 0.0
      %1062 = vmatprep.subr.mxu0 0.0
      %1063 = vmatpush1.msra.mxu0 0.0
      %1064 = vmatprep.subr.mxu0 0.0
      %1065 = vmatpush1.msra.mxu0 0.0
      %1066 = vmatprep.subr.mxu0 0.0
      %1067 = vmatpush1.msra.mxu0 0.0
      %1068 = vmatprep.subr.mxu0 0.0
      %1069 = vmatpush1.msra.mxu0 0.0
      %1070 = vmatprep.subr.mxu0 0.0
      %1071 = vmatpush1.msra.mxu0 0.0
      %1072 = vmatprep.subr.mxu0 0.0
      %1073 = vmatpush1.msra.mxu0 0.0
      %1074 = vmatprep.subr.mxu0 0.0
      %1075 = vmatpush1.msra.mxu0 0.0
      %1076 = vmatprep.mubr.f32.mxu0 0.0
      %1077 = vmatmul.mubr.f32.gmra.mrb[0].mxu0 %v933
      %v1078 = vpop.f32.mrb[0].mxu0
      %v1079 = vadd.f32 0.0, %v1078
      %v1080 = vpop.f32.mrb[0].mxu0
      %1081 = vdwg.mxu0
      %v1082 = vadd.f32 %v918, %v1008
      %v1083 = vadd.f32 %v919, %v1010
      %v1084 = vadd.f32 %v920, %v1079
      %s1085 = scalar_lea.vmem %s2, 32
      %v1086 = vld [vmem:[%s1085] sm:$0xff]
      %1087 = vrot.lane.b32.xlu0 %v366, 109
      %v1088 = vpop.permute.xlu0 %1087
      %1089 = vrot.lane.b32.xlu0 %v368, 109
      %v1090 = vpop.permute.xlu0 %1089
      %1091 = vrot.lane.b32.xlu0 %v437, 109
      %v1092 = vpop.permute.xlu0 %1091
      %vm1093 = vcmask 891904
      %v1094 = vsel %vm1093, %v1088, %v1090
      %v1095 = vsel %vm1093, %v1090, %v1092
      %v1097 = vsel %vm455, %v1086, 0
      %v1099 = vsel %vm459, %v1094, 0
      %v1101 = vsel %vm459, %v1095, 0
      %v1103 = vsel %vm459, %v1092, 0
      %1105 = vmatprep.subr.mxu0 %v1101
      %1106 = vmatpush1.msra.mxu0 %v1099
      %1107 = vmatprep.subr.mxu0 0.0
      %1108 = vmatpush1.msra.mxu0 0.0
      %1109 = vmatprep.subr.mxu0 0.0
      %1110 = vmatpush1.msra.mxu0 0.0
      %1111 = vmatprep.subr.mxu0 0.0
      %1112 = vmatpush1.msra.mxu0 0.0
      %1113 = vmatprep.subr.mxu0 0.0
      %1114 = vmatpush1.msra.mxu0 0.0
      %1115 = vmatprep.subr.mxu0 0.0
      %1116 = vmatpush1.msra.mxu0 0.0
      %1117 = vmatprep.subr.mxu0 0.0
      %1118 = vmatpush1.msra.mxu0 0.0
      %1119 = vmatprep.subr.mxu0 0.0
      %1120 = vmatpush1.msra.mxu0 0.0
      %1121 = vmatprep.subr.mxu0 0.0
      %1122 = vmatpush1.msra.mxu0 0.0
      %1123 = vmatprep.subr.mxu0 0.0
      %1124 = vmatpush1.msra.mxu0 0.0
      %1125 = vmatprep.subr.mxu0 0.0
      %1126 = vmatpush1.msra.mxu0 0.0
      %1127 = vmatprep.subr.mxu0 0.0
      %1128 = vmatpush1.msra.mxu0 0.0
      %1129 = vmatprep.subr.mxu0 0.0
      %1130 = vmatpush1.msra.mxu0 0.0
      %1131 = vmatprep.subr.mxu0 0.0
      %1132 = vmatpush1.msra.mxu0 0.0
      %1133 = vmatprep.subr.mxu0 0.0
      %1134 = vmatpush1.msra.mxu0 0.0
      %1135 = vmatprep.subr.mxu0 0.0
      %1136 = vmatpush1.msra.mxu0 0.0
      %1137 = vmatprep.subr.mxu0 0.0
      %1138 = vmatpush1.msra.mxu0 0.0
      %1139 = vmatprep.subr.mxu0 0.0
      %1140 = vmatpush1.msra.mxu0 0.0
      %1141 = vmatprep.subr.mxu0 0.0
      %1142 = vmatpush1.msra.mxu0 0.0
      %1143 = vmatprep.subr.mxu0 0.0
      %1144 = vmatpush1.msra.mxu0 0.0
      %1145 = vmatprep.subr.mxu0 0.0
      %1146 = vmatpush1.msra.mxu0 0.0
      %1147 = vmatprep.subr.mxu0 0.0
      %1148 = vmatpush1.msra.mxu0 0.0
      %1149 = vmatprep.subr.mxu0 0.0
      %1150 = vmatpush1.msra.mxu0 0.0
      %1151 = vmatprep.subr.mxu0 0.0
      %1152 = vmatpush1.msra.mxu0 0.0
      %1153 = vmatprep.subr.mxu0 0.0
      %1154 = vmatpush1.msra.mxu0 0.0
      %1155 = vmatprep.subr.mxu0 0.0
      %1156 = vmatpush1.msra.mxu0 0.0
      %1157 = vmatprep.subr.mxu0 0.0
      %1158 = vmatpush1.msra.mxu0 0.0
      %1159 = vmatprep.subr.mxu0 0.0
      %1160 = vmatpush1.msra.mxu0 0.0
      %1161 = vmatprep.subr.mxu0 0.0
      %1162 = vmatpush1.msra.mxu0 0.0
      %1163 = vmatprep.subr.mxu0 0.0
      %1164 = vmatpush1.msra.mxu0 0.0
      %1165 = vmatprep.subr.mxu0 0.0
      %1166 = vmatpush1.msra.mxu0 0.0
      %1167 = vmatprep.subr.mxu0 0.0
      %1168 = vmatpush1.msra.mxu0 0.0
      %1169 = vmatprep.mubr.f32.mxu0 0.0
      %1170 = vmatmul.mubr.f32.gmra.mrb[0].mxu0 %v1097
      %v1171 = vpop.f32.mrb[0].mxu0
      %v1172 = vadd.f32 0.0, %v1171
      %v1173 = vpop.f32.mrb[0].mxu0
      %v1174 = vadd.f32 0.0, %v1173
      %1175 = vdwg.mxu0
      %1176 = vmatprep.subr.mxu0 0.0
      %1177 = vmatpush1.msra.mxu0 %v1103
      %1178 = vmatprep.subr.mxu0 0.0
      %1179 = vmatpush1.msra.mxu0 0.0
      %1180 = vmatprep.subr.mxu0 0.0
      %1181 = vmatpush1.msra.mxu0 0.0
      %1182 = vmatprep.subr.mxu0 0.0
      %1183 = vmatpush1.msra.mxu0 0.0
      %1184 = vmatprep.subr.mxu0 0.0
      %1185 = vmatpush1.msra.mxu0 0.0
      %1186 = vmatprep.subr.mxu0 0.0
      %1187 = vmatpush1.msra.mxu0 0.0
      %1188 = vmatprep.subr.mxu0 0.0
      %1189 = vmatpush1.msra.mxu0 0.0
      %1190 = vmatprep.subr.mxu0 0.0
      %1191 = vmatpush1.msra.mxu0 0.0
      %1192 = vmatprep.subr.mxu0 0.0
      %1193 = vmatpush1.msra.mxu0 0.0
      %1194 = vmatprep.subr.mxu0 0.0
      %1195 = vmatpush1.msra.mxu0 0.0
      %1196 = vmatprep.subr.mxu0 0.0
      %1197 = vmatpush1.msra.mxu0 0.0
      %1198 = vmatprep.subr.mxu0 0.0
      %1199 = vmatpush1.msra.mxu0 0.0
      %1200 = vmatprep.subr.mxu0 0.0
      %1201 = vmatpush1.msra.mxu0 0.0
      %1202 = vmatprep.subr.mxu0 0.0
      %1203 = vmatpush1.msra.mxu0 0.0
      %1204 = vmatprep.subr.mxu0 0.0
      %1205 = vmatpush1.msra.mxu0 0.0
      %1206 = vmatprep.subr.mxu0 0.0
      %1207 = vmatpush1.msra.mxu0 0.0
      %1208 = vmatprep.subr.mxu0 0.0
      %1209 = vmatpush1.msra.mxu0 0.0
      %1210 = vmatprep.subr.mxu0 0.0
      %1211 = vmatpush1.msra.mxu0 0.0
      %1212 = vmatprep.subr.mxu0 0.0
      %1213 = vmatpush1.msra.mxu0 0.0
      %1214 = vmatprep.subr.mxu0 0.0
      %1215 = vmatpush1.msra.mxu0 0.0
      %1216 = vmatprep.subr.mxu0 0.0
      %1217 = vmatpush1.msra.mxu0 0.0
      %1218 = vmatprep.subr.mxu0 0.0
      %1219 = vmatpush1.msra.mxu0 0.0
      %1220 = vmatprep.subr.mxu0 0.0
      %1221 = vmatpush1.msra.mxu0 0.0
      %1222 = vmatprep.subr.mxu0 0.0
      %1223 = vmatpush1.msra.mxu0 0.0
      %1224 = vmatprep.subr.mxu0 0.0
      %1225 = vmatpush1.msra.mxu0 0.0
      %1226 = vmatprep.subr.mxu0 0.0
      %1227 = vmatpush1.msra.mxu0 0.0
      %1228 = vmatprep.subr.mxu0 0.0
      %1229 = vmatpush1.msra.mxu0 0.0
      %1230 = vmatprep.subr.mxu0 0.0
      %1231 = vmatpush1.msra.mxu0 0.0
      %1232 = vmatprep.subr.mxu0 0.0
      %1233 = vmatpush1.msra.mxu0 0.0
      %1234 = vmatprep.subr.mxu0 0.0
      %1235 = vmatpush1.msra.mxu0 0.0
      %1236 = vmatprep.subr.mxu0 0.0
      %1237 = vmatpush1.msra.mxu0 0.0
      %1238 = vmatprep.subr.mxu0 0.0
      %1239 = vmatpush1.msra.mxu0 0.0
      %1240 = vmatprep.mubr.f32.mxu0 0.0
      %1241 = vmatmul.mubr.f32.gmra.mrb[0].mxu0 %v1097
      %v1242 = vpop.f32.mrb[0].mxu0
      %v1243 = vadd.f32 0.0, %v1242
      %v1244 = vpop.f32.mrb[0].mxu0
      %1245 = vdwg.mxu0
      %v1246 = vadd.f32 %v1082, %v1172
      %v1247 = vadd.f32 %v1083, %v1174
      %v1248 = vadd.f32 %v1084, %v1243
      %s1249 = scalar_lea.vmem %s2, 40
      %v1250 = vld [vmem:[%s1249] sm:$0xff]
      %1251 = vrot.lane.b32.xlu0 %v366, 108
      %v1252 = vpop.permute.xlu0 %1251
      %1253 = vrot.lane.b32.xlu0 %v368, 108
      %v1254 = vpop.permute.xlu0 %1253
      %1255 = vrot.lane.b32.xlu0 %v437, 108
      %v1256 = vpop.permute.xlu0 %1255
      %vm1257 = vcmask 883712
      %v1258 = vsel %vm1257, %v1252, %v1254
      %v1259 = vsel %vm1257, %v1254, %v1256
      %v1261 = vsel %vm455, %v1250, 0
      %v1263 = vsel %vm459, %v1258, 0
      %v1265 = vsel %vm459, %v1259, 0
      %v1267 = vsel %vm459, %v1256, 0
      %1269 = vmatprep.subr.mxu0 %v1265
      %1270 = vmatpush1.msra.mxu0 %v1263
      %1271 = vmatprep.subr.mxu0 0.0
      %1272 = vmatpush1.msra.mxu0 0.0
      %1273 = vmatprep.subr.mxu0 0.0
      %1274 = vmatpush1.msra.mxu0 0.0
      %1275 = vmatprep.subr.mxu0 0.0
      %1276 = vmatpush1.msra.mxu0 0.0
      %1277 = vmatprep.subr.mxu0 0.0
      %1278 = vmatpush1.msra.mxu0 0.0
      %1279 = vmatprep.subr.mxu0 0.0
      %1280 = vmatpush1.msra.mxu0 0.0
      %1281 = vmatprep.subr.mxu0 0.0
      %1282 = vmatpush1.msra.mxu0 0.0
      %1283 = vmatprep.subr.mxu0 0.0
      %1284 = vmatpush1.msra.mxu0 0.0
      %1285 = vmatprep.subr.mxu0 0.0
      %1286 = vmatpush1.msra.mxu0 0.0
      %1287 = vmatprep.subr.mxu0 0.0
      %1288 = vmatpush1.msra.mxu0 0.0
      %1289 = vmatprep.subr.mxu0 0.0
      %1290 = vmatpush1.msra.mxu0 0.0
      %1291 = vmatprep.subr.mxu0 0.0
      %1292 = vmatpush1.msra.mxu0 0.0
      %1293 = vmatprep.subr.mxu0 0.0
      %1294 = vmatpush1.msra.mxu0 0.0
      %1295 = vmatprep.subr.mxu0 0.0
      %1296 = vmatpush1.msra.mxu0 0.0
      %1297 = vmatprep.subr.mxu0 0.0
      %1298 = vmatpush1.msra.mxu0 0.0
      %1299 = vmatprep.subr.mxu0 0.0
      %1300 = vmatpush1.msra.mxu0 0.0
      %1301 = vmatprep.subr.mxu0 0.0
      %1302 = vmatpush1.msra.mxu0 0.0
      %1303 = vmatprep.subr.mxu0 0.0
      %1304 = vmatpush1.msra.mxu0 0.0
      %1305 = vmatprep.subr.mxu0 0.0
      %1306 = vmatpush1.msra.mxu0 0.0
      %1307 = vmatprep.subr.mxu0 0.0
      %1308 = vmatpush1.msra.mxu0 0.0
      %1309 = vmatprep.subr.mxu0 0.0
      %1310 = vmatpush1.msra.mxu0 0.0
      %1311 = vmatprep.subr.mxu0 0.0
      %1312 = vmatpush1.msra.mxu0 0.0
      %1313 = vmatprep.subr.mxu0 0.0
      %1314 = vmatpush1.msra.mxu0 0.0
      %1315 = vmatprep.subr.mxu0 0.0
      %1316 = vmatpush1.msra.mxu0 0.0
      %1317 = vmatprep.subr.mxu0 0.0
      %1318 = vmatpush1.msra.mxu0 0.0
      %1319 = vmatprep.subr.mxu0 0.0
      %1320 = vmatpush1.msra.mxu0 0.0
      %1321 = vmatprep.subr.mxu0 0.0
      %1322 = vmatpush1.msra.mxu0 0.0
      %1323 = vmatprep.subr.mxu0 0.0
      %1324 = vmatpush1.msra.mxu0 0.0
      %1325 = vmatprep.subr.mxu0 0.0
      %1326 = vmatpush1.msra.mxu0 0.0
      %1327 = vmatprep.subr.mxu0 0.0
      %1328 = vmatpush1.msra.mxu0 0.0
      %1329 = vmatprep.subr.mxu0 0.0
      %1330 = vmatpush1.msra.mxu0 0.0
      %1331 = vmatprep.subr.mxu0 0.0
      %1332 = vmatpush1.msra.mxu0 0.0
      %1333 = vmatprep.mubr.f32.mxu0 0.0
      %1334 = vmatmul.mubr.f32.gmra.mrb[0].mxu0 %v1261
      %v1335 = vpop.f32.mrb[0].mxu0
      %v1336 = vadd.f32 0.0, %v1335
      %v1337 = vpop.f32.mrb[0].mxu0
      %v1338 = vadd.f32 0.0, %v1337
      %1339 = vdwg.mxu0
      %1340 = vmatprep.subr.mxu0 0.0
      %1341 = vmatpush1.msra.mxu0 %v1267
      %1342 = vmatprep.subr.mxu0 0.0
      %1343 = vmatpush1.msra.mxu0 0.0
      %1344 = vmatprep.subr.mxu0 0.0
      %1345 = vmatpush1.msra.mxu0 0.0
      %1346 = vmatprep.subr.mxu0 0.0
      %1347 = vmatpush1.msra.mxu0 0.0
      %1348 = vmatprep.subr.mxu0 0.0
      %1349 = vmatpush1.msra.mxu0 0.0
      %1350 = vmatprep.subr.mxu0 0.0
      %1351 = vmatpush1.msra.mxu0 0.0
      %1352 = vmatprep.subr.mxu0 0.0
      %1353 = vmatpush1.msra.mxu0 0.0
      %1354 = vmatprep.subr.mxu0 0.0
      %1355 = vmatpush1.msra.mxu0 0.0
      %1356 = vmatprep.subr.mxu0 0.0
      %1357 = vmatpush1.msra.mxu0 0.0
      %1358 = vmatprep.subr.mxu0 0.0
      %1359 = vmatpush1.msra.mxu0 0.0
      %1360 = vmatprep.subr.mxu0 0.0
      %1361 = vmatpush1.msra.mxu0 0.0
      %1362 = vmatprep.subr.mxu0 0.0
      %1363 = vmatpush1.msra.mxu0 0.0
      %1364 = vmatprep.subr.mxu0 0.0
      %1365 = vmatpush1.msra.mxu0 0.0
      %1366 = vmatprep.subr.mxu0 0.0
      %1367 = vmatpush1.msra.mxu0 0.0
      %1368 = vmatprep.subr.mxu0 0.0
      %1369 = vmatpush1.msra.mxu0 0.0
      %1370 = vmatprep.subr.mxu0 0.0
      %1371 = vmatpush1.msra.mxu0 0.0
      %1372 = vmatprep.subr.mxu0 0.0
      %1373 = vmatpush1.msra.mxu0 0.0
      %1374 = vmatprep.subr.mxu0 0.0
      %1375 = vmatpush1.msra.mxu0 0.0
      %1376 = vmatprep.subr.mxu0 0.0
      %1377 = vmatpush1.msra.mxu0 0.0
      %1378 = vmatprep.subr.mxu0 0.0
      %1379 = vmatpush1.msra.mxu0 0.0
      %1380 = vmatprep.subr.mxu0 0.0
      %1381 = vmatpush1.msra.mxu0 0.0
      %1382 = vmatprep.subr.mxu0 0.0
      %1383 = vmatpush1.msra.mxu0 0.0
      %1384 = vmatprep.subr.mxu0 0.0
      %1385 = vmatpush1.msra.mxu0 0.0
      %1386 = vmatprep.subr.mxu0 0.0
      %1387 = vmatpush1.msra.mxu0 0.0
      %1388 = vmatprep.subr.mxu0 0.0
      %1389 = vmatpush1.msra.mxu0 0.0
      %1390 = vmatprep.subr.mxu0 0.0
      %1391 = vmatpush1.msra.mxu0 0.0
      %1392 = vmatprep.subr.mxu0 0.0
      %1393 = vmatpush1.msra.mxu0 0.0
      %1394 = vmatprep.subr.mxu0 0.0
      %1395 = vmatpush1.msra.mxu0 0.0
      %1396 = vmatprep.subr.mxu0 0.0
      %1397 = vmatpush1.msra.mxu0 0.0
      %1398 = vmatprep.subr.mxu0 0.0
      %1399 = vmatpush1.msra.mxu0 0.0
      %1400 = vmatprep.subr.mxu0 0.0
      %1401 = vmatpush1.msra.mxu0 0.0
      %1402 = vmatprep.subr.mxu0 0.0
      %1403 = vmatpush1.msra.mxu0 0.0
      %1404 = vmatprep.mubr.f32.mxu0 0.0
      %1405 = vmatmul.mubr.f32.gmra.mrb[0].mxu0 %v1261
      %v1406 = vpop.f32.mrb[0].mxu0
      %v1407 = vadd.f32 0.0, %v1406
      %v1408 = vpop.f32.mrb[0].mxu0
      %1409 = vdwg.mxu0
      %v1410 = vadd.f32 %v1246, %v1336
      %v1411 = vadd.f32 %v1247, %v1338
      %v1412 = vadd.f32 %v1248, %v1407
      %s1413 = scalar_lea.vmem %s2, 48
      %v1414 = vld [vmem:[%s1413] sm:$0xff]
      %1415 = vrot.lane.b32.xlu0 %v366, 92
      %v1416 = vpop.permute.xlu0 %1415
      %1417 = vrot.lane.b32.xlu0 %v368, 92
      %v1418 = vpop.permute.xlu0 %1417
      %1419 = vrot.lane.b32.xlu0 %v437, 92
      %v1420 = vpop.permute.xlu0 %1419
      %vm1421 = vcmask 752640
      %v1422 = vsel %vm1421, %v1416, %v1418
      %v1423 = vsel %vm1421, %v1418, %v1420
      %v1425 = vsel %vm455, %v1414, 0
      %v1427 = vsel %vm459, %v1422, 0
      %v1429 = vsel %vm459, %v1423, 0
      %v1431 = vsel %vm459, %v1420, 0
      %1433 = vmatprep.subr.mxu0 %v1429
      %1434 = vmatpush1.msra.mxu0 %v1427
      %1435 = vmatprep.subr.mxu0 0.0
      %1436 = vmatpush1.msra.mxu0 0.0
      %1437 = vmatprep.subr.mxu0 0.0
      %1438 = vmatpush1.msra.mxu0 0.0
      %1439 = vmatprep.subr.mxu0 0.0
      %1440 = vmatpush1.msra.mxu0 0.0
      %1441 = vmatprep.subr.mxu0 0.0
      %1442 = vmatpush1.msra.mxu0 0.0
      %1443 = vmatprep.subr.mxu0 0.0
      %1444 = vmatpush1.msra.mxu0 0.0
      %1445 = vmatprep.subr.mxu0 0.0
      %1446 = vmatpush1.msra.mxu0 0.0
      %1447 = vmatprep.subr.mxu0 0.0
      %1448 = vmatpush1.msra.mxu0 0.0
      %1449 = vmatprep.subr.mxu0 0.0
      %1450 = vmatpush1.msra.mxu0 0.0
      %1451 = vmatprep.subr.mxu0 0.0
      %1452 = vmatpush1.msra.mxu0 0.0
      %1453 = vmatprep.subr.mxu0 0.0
      %1454 = vmatpush1.msra.mxu0 0.0
      %1455 = vmatprep.subr.mxu0 0.0
      %1456 = vmatpush1.msra.mxu0 0.0
      %1457 = vmatprep.subr.mxu0 0.0
      %1458 = vmatpush1.msra.mxu0 0.0
      %1459 = vmatprep.subr.mxu0 0.0
      %1460 = vmatpush1.msra.mxu0 0.0
      %1461 = vmatprep.subr.mxu0 0.0
      %1462 = vmatpush1.msra.mxu0 0.0
      %1463 = vmatprep.subr.mxu0 0.0
      %1464 = vmatpush1.msra.mxu0 0.0
      %1465 = vmatprep.subr.mxu0 0.0
      %1466 = vmatpush1.msra.mxu0 0.0
      %1467 = vmatprep.subr.mxu0 0.0
      %1468 = vmatpush1.msra.mxu0 0.0
      %1469 = vmatprep.subr.mxu0 0.0
      %1470 = vmatpush1.msra.mxu0 0.0
      %1471 = vmatprep.subr.mxu0 0.0
      %1472 = vmatpush1.msra.mxu0 0.0
      %1473 = vmatprep.subr.mxu0 0.0
      %1474 = vmatpush1.msra.mxu0 0.0
      %1475 = vmatprep.subr.mxu0 0.0
      %1476 = vmatpush1.msra.mxu0 0.0
      %1477 = vmatprep.subr.mxu0 0.0
      %1478 = vmatpush1.msra.mxu0 0.0
      %1479 = vmatprep.subr.mxu0 0.0
      %1480 = vmatpush1.msra.mxu0 0.0
      %1481 = vmatprep.subr.mxu0 0.0
      %1482 = vmatpush1.msra.mxu0 0.0
      %1483 = vmatprep.subr.mxu0 0.0
      %1484 = vmatpush1.msra.mxu0 0.0
      %1485 = vmatprep.subr.mxu0 0.0
      %1486 = vmatpush1.msra.mxu0 0.0
      %1487 = vmatprep.subr.mxu0 0.0
      %1488 = vmatpush1.msra.mxu0 0.0
      %1489 = vmatprep.subr.mxu0 0.0
      %1490 = vmatpush1.msra.mxu0 0.0
      %1491 = vmatprep.subr.mxu0 0.0
      %1492 = vmatpush1.msra.mxu0 0.0
      %1493 = vmatprep.subr.mxu0 0.0
      %1494 = vmatpush1.msra.mxu0 0.0
      %1495 = vmatprep.subr.mxu0 0.0
      %1496 = vmatpush1.msra.mxu0 0.0
      %1497 = vmatprep.mubr.f32.mxu0 0.0
      %1498 = vmatmul.mubr.f32.gmra.mrb[0].mxu0 %v1425
      %v1499 = vpop.f32.mrb[0].mxu0
      %v1500 = vadd.f32 0.0, %v1499
      %v1501 = vpop.f32.mrb[0].mxu0
      %v1502 = vadd.f32 0.0, %v1501
      %1503 = vdwg.mxu0
      %1504 = vmatprep.subr.mxu0 0.0
      %1505 = vmatpush1.msra.mxu0 %v1431
      %1506 = vmatprep.subr.mxu0 0.0
      %1507 = vmatpush1.msra.mxu0 0.0
      %1508 = vmatprep.subr.mxu0 0.0
      %1509 = vmatpush1.msra.mxu0 0.0
      %1510 = vmatprep.subr.mxu0 0.0
      %1511 = vmatpush1.msra.mxu0 0.0
      %1512 = vmatprep.subr.mxu0 0.0
      %1513 = vmatpush1.msra.mxu0 0.0
      %1514 = vmatprep.subr.mxu0 0.0
      %1515 = vmatpush1.msra.mxu0 0.0
      %1516 = vmatprep.subr.mxu0 0.0
      %1517 = vmatpush1.msra.mxu0 0.0
      %1518 = vmatprep.subr.mxu0 0.0
      %1519 = vmatpush1.msra.mxu0 0.0
      %1520 = vmatprep.subr.mxu0 0.0
      %1521 = vmatpush1.msra.mxu0 0.0
      %1522 = vmatprep.subr.mxu0 0.0
      %1523 = vmatpush1.msra.mxu0 0.0
      %1524 = vmatprep.subr.mxu0 0.0
      %1525 = vmatpush1.msra.mxu0 0.0
      %1526 = vmatprep.subr.mxu0 0.0
      %1527 = vmatpush1.msra.mxu0 0.0
      %1528 = vmatprep.subr.mxu0 0.0
      %1529 = vmatpush1.msra.mxu0 0.0
      %1530 = vmatprep.subr.mxu0 0.0
      %1531 = vmatpush1.msra.mxu0 0.0
      %1532 = vmatprep.subr.mxu0 0.0
      %1533 = vmatpush1.msra.mxu0 0.0
      %1534 = vmatprep.subr.mxu0 0.0
      %1535 = vmatpush1.msra.mxu0 0.0
      %1536 = vmatprep.subr.mxu0 0.0
      %1537 = vmatpush1.msra.mxu0 0.0
      %1538 = vmatprep.subr.mxu0 0.0
      %1539 = vmatpush1.msra.mxu0 0.0
      %1540 = vmatprep.subr.mxu0 0.0
      %1541 = vmatpush1.msra.mxu0 0.0
      %1542 = vmatprep.subr.mxu0 0.0
      %1543 = vmatpush1.msra.mxu0 0.0
      %1544 = vmatprep.subr.mxu0 0.0
      %1545 = vmatpush1.msra.mxu0 0.0
      %1546 = vmatprep.subr.mxu0 0.0
      %1547 = vmatpush1.msra.mxu0 0.0
      %1548 = vmatprep.subr.mxu0 0.0
      %1549 = vmatpush1.msra.mxu0 0.0
      %1550 = vmatprep.subr.mxu0 0.0
      %1551 = vmatpush1.msra.mxu0 0.0
      %1552 = vmatprep.subr.mxu0 0.0
      %1553 = vmatpush1.msra.mxu0 0.0
      %1554 = vmatprep.subr.mxu0 0.0
      %1555 = vmatpush1.msra.mxu0 0.0
      %1556 = vmatprep.subr.mxu0 0.0
      %1557 = vmatpush1.msra.mxu0 0.0
      %1558 = vmatprep.subr.mxu0 0.0
      %1559 = vmatpush1.msra.mxu0 0.0
      %1560 = vmatprep.subr.mxu0 0.0
      %1561 = vmatpush1.msra.mxu0 0.0
      %1562 = vmatprep.subr.mxu0 0.0
      %1563 = vmatpush1.msra.mxu0 0.0
      %1564 = vmatprep.subr.mxu0 0.0
      %1565 = vmatpush1.msra.mxu0 0.0
      %1566 = vmatprep.subr.mxu0 0.0
      %1567 = vmatpush1.msra.mxu0 0.0
      %1568 = vmatprep.mubr.f32.mxu0 0.0
      %1569 = vmatmul.mubr.f32.gmra.mrb[0].mxu0 %v1425
      %v1570 = vpop.f32.mrb[0].mxu0
      %v1571 = vadd.f32 0.0, %v1570
      %v1572 = vpop.f32.mrb[0].mxu0
      %1573 = vdwg.mxu0
      %v1574 = vadd.f32 %v1410, %v1500
      %v1575 = vadd.f32 %v1411, %v1502
      %v1576 = vadd.f32 %v1412, %v1571
      %s1577 = scalar_lea.vmem %s2, 56
      %v1578 = vld [vmem:[%s1577] sm:$0xff]
      %1579 = vrot.lane.b32.xlu0 %v366, 91
      %v1580 = vpop.permute.xlu0 %1579
      %1581 = vrot.lane.b32.xlu0 %v368, 91
      %v1582 = vpop.permute.xlu0 %1581
      %1583 = vrot.lane.b32.xlu0 %v437, 91
      %v1584 = vpop.permute.xlu0 %1583
      %vm1585 = vcmask 744448
      %v1586 = vsel %vm1585, %v1580, %v1582
      %v1587 = vsel %vm1585, %v1582, %v1584
      %v1589 = vsel %vm455, %v1578, 0
      %v1591 = vsel %vm459, %v1586, 0
      %v1593 = vsel %vm459, %v1587, 0
      %v1595 = vsel %vm459, %v1584, 0
      %1597 = vmatprep.subr.mxu0 %v1593
      %1598 = vmatpush1.msra.mxu0 %v1591
      %1599 = vmatprep.subr.mxu0 0.0
      %1600 = vmatpush1.msra.mxu0 0.0
      %1601 = vmatprep.subr.mxu0 0.0
      %1602 = vmatpush1.msra.mxu0 0.0
      %1603 = vmatprep.subr.mxu0 0.0
      %1604 = vmatpush1.msra.mxu0 0.0
      %1605 = vmatprep.subr.mxu0 0.0
      %1606 = vmatpush1.msra.mxu0 0.0
      %1607 = vmatprep.subr.mxu0 0.0
      %1608 = vmatpush1.msra.mxu0 0.0
      %1609 = vmatprep.subr.mxu0 0.0
      %1610 = vmatpush1.msra.mxu0 0.0
      %1611 = vmatprep.subr.mxu0 0.0
      %1612 = vmatpush1.msra.mxu0 0.0
      %1613 = vmatprep.subr.mxu0 0.0
      %1614 = vmatpush1.msra.mxu0 0.0
      %1615 = vmatprep.subr.mxu0 0.0
      %1616 = vmatpush1.msra.mxu0 0.0
      %1617 = vmatprep.subr.mxu0 0.0
      %1618 = vmatpush1.msra.mxu0 0.0
      %1619 = vmatprep.subr.mxu0 0.0
      %1620 = vmatpush1.msra.mxu0 0.0
      %1621 = vmatprep.subr.mxu0 0.0
      %1622 = vmatpush1.msra.mxu0 0.0
      %1623 = vmatprep.subr.mxu0 0.0
      %1624 = vmatpush1.msra.mxu0 0.0
      %1625 = vmatprep.subr.mxu0 0.0
      %1626 = vmatpush1.msra.mxu0 0.0
      %1627 = vmatprep.subr.mxu0 0.0
      %1628 = vmatpush1.msra.mxu0 0.0
      %1629 = vmatprep.subr.mxu0 0.0
      %1630 = vmatpush1.msra.mxu0 0.0
      %1631 = vmatprep.subr.mxu0 0.0
      %1632 = vmatpush1.msra.mxu0 0.0
      %1633 = vmatprep.subr.mxu0 0.0
      %1634 = vmatpush1.msra.mxu0 0.0
      %1635 = vmatprep.subr.mxu0 0.0
      %1636 = vmatpush1.msra.mxu0 0.0
      %1637 = vmatprep.subr.mxu0 0.0
      %1638 = vmatpush1.msra.mxu0 0.0
      %1639 = vmatprep.subr.mxu0 0.0
      %1640 = vmatpush1.msra.mxu0 0.0
      %1641 = vmatprep.subr.mxu0 0.0
      %1642 = vmatpush1.msra.mxu0 0.0
      %1643 = vmatprep.subr.mxu0 0.0
      %1644 = vmatpush1.msra.mxu0 0.0
      %1645 = vmatprep.subr.mxu0 0.0
      %1646 = vmatpush1.msra.mxu0 0.0
      %1647 = vmatprep.subr.mxu0 0.0
      %1648 = vmatpush1.msra.mxu0 0.0
      %1649 = vmatprep.subr.mxu0 0.0
      %1650 = vmatpush1.msra.mxu0 0.0
      %1651 = vmatprep.subr.mxu0 0.0
      %1652 = vmatpush1.msra.mxu0 0.0
      %1653 = vmatprep.subr.mxu0 0.0
      %1654 = vmatpush1.msra.mxu0 0.0
      %1655 = vmatprep.subr.mxu0 0.0
      %1656 = vmatpush1.msra.mxu0 0.0
      %1657 = vmatprep.subr.mxu0 0.0
      %1658 = vmatpush1.msra.mxu0 0.0
      %1659 = vmatprep.subr.mxu0 0.0
      %1660 = vmatpush1.msra.mxu0 0.0
      %1661 = vmatprep.mubr.f32.mxu0 0.0
      %1662 = vmatmul.mubr.f32.gmra.mrb[0].mxu0 %v1589
      %v1663 = vpop.f32.mrb[0].mxu0
      %v1664 = vadd.f32 0.0, %v1663
      %v1665 = vpop.f32.mrb[0].mxu0
      %v1666 = vadd.f32 0.0, %v1665
      %1667 = vdwg.mxu0
      %1668 = vmatprep.subr.mxu0 0.0
      %1669 = vmatpush1.msra.mxu0 %v1595
      %1670 = vmatprep.subr.mxu0 0.0
      %1671 = vmatpush1.msra.mxu0 0.0
      %1672 = vmatprep.subr.mxu0 0.0
      %1673 = vmatpush1.msra.mxu0 0.0
      %1674 = vmatprep.subr.mxu0 0.0
      %1675 = vmatpush1.msra.mxu0 0.0
      %1676 = vmatprep.subr.mxu0 0.0
      %1677 = vmatpush1.msra.mxu0 0.0
      %1678 = vmatprep.subr.mxu0 0.0
      %1679 = vmatpush1.msra.mxu0 0.0
      %1680 = vmatprep.subr.mxu0 0.0
      %1681 = vmatpush1.msra.mxu0 0.0
      %1682 = vmatprep.subr.mxu0 0.0
      %1683 = vmatpush1.msra.mxu0 0.0
      %1684 = vmatprep.subr.mxu0 0.0
      %1685 = vmatpush1.msra.mxu0 0.0
      %1686 = vmatprep.subr.mxu0 0.0
      %1687 = vmatpush1.msra.mxu0 0.0
      %1688 = vmatprep.subr.mxu0 0.0
      %1689 = vmatpush1.msra.mxu0 0.0
      %1690 = vmatprep.subr.mxu0 0.0
      %1691 = vmatpush1.msra.mxu0 0.0
      %1692 = vmatprep.subr.mxu0 0.0
      %1693 = vmatpush1.msra.mxu0 0.0
      %1694 = vmatprep.subr.mxu0 0.0
      %1695 = vmatpush1.msra.mxu0 0.0
      %1696 = vmatprep.subr.mxu0 0.0
      %1697 = vmatpush1.msra.mxu0 0.0
      %1698 = vmatprep.subr.mxu0 0.0
      %1699 = vmatpush1.msra.mxu0 0.0
      %1700 = vmatprep.subr.mxu0 0.0
      %1701 = vmatpush1.msra.mxu0 0.0
      %1702 = vmatprep.subr.mxu0 0.0
      %1703 = vmatpush1.msra.mxu0 0.0
      %1704 = vmatprep.subr.mxu0 0.0
      %1705 = vmatpush1.msra.mxu0 0.0
      %1706 = vmatprep.subr.mxu0 0.0
      %1707 = vmatpush1.msra.mxu0 0.0
      %1708 = vmatprep.subr.mxu0 0.0
      %1709 = vmatpush1.msra.mxu0 0.0
      %1710 = vmatprep.subr.mxu0 0.0
      %1711 = vmatpush1.msra.mxu0 0.0
      %1712 = vmatprep.subr.mxu0 0.0
      %1713 = vmatpush1.msra.mxu0 0.0
      %1714 = vmatprep.subr.mxu0 0.0
      %1715 = vmatpush1.msra.mxu0 0.0
      %1716 = vmatprep.subr.mxu0 0.0
      %1717 = vmatpush1.msra.mxu0 0.0
      %1718 = vmatprep.subr.mxu0 0.0
      %1719 = vmatpush1.msra.mxu0 0.0
      %1720 = vmatprep.subr.mxu0 0.0
      %1721 = vmatpush1.msra.mxu0 0.0
      %1722 = vmatprep.subr.mxu0 0.0
      %1723 = vmatpush1.msra.mxu0 0.0
      %1724 = vmatprep.subr.mxu0 0.0
      %1725 = vmatpush1.msra.mxu0 0.0
      %1726 = vmatprep.subr.mxu0 0.0
      %1727 = vmatpush1.msra.mxu0 0.0
      %1728 = vmatprep.subr.mxu0 0.0
      %1729 = vmatpush1.msra.mxu0 0.0
      %1730 = vmatprep.subr.mxu0 0.0
      %1731 = vmatpush1.msra.mxu0 0.0
      %1732 = vmatprep.mubr.f32.mxu0 0.0
      %1733 = vmatmul.mubr.f32.gmra.mrb[0].mxu0 %v1589
      %v1734 = vpop.f32.mrb[0].mxu0
      %v1735 = vadd.f32 0.0, %v1734
      %v1736 = vpop.f32.mrb[0].mxu0
      %1737 = vdwg.mxu0
      %v1738 = vadd.f32 %v1574, %v1664
      %v1739 = vadd.f32 %v1575, %v1666
      %v1740 = vadd.f32 %v1576, %v1735
      %s1741 = scalar_lea.vmem %s2, 64
      %v1742 = vld [vmem:[%s1741] sm:$0xff]
      %1743 = vrot.lane.b32.xlu0 %v366, 90
      %v1744 = vpop.permute.xlu0 %1743
      %1745 = vrot.lane.b32.xlu0 %v368, 90
      %v1746 = vpop.permute.xlu0 %1745
      %1747 = vrot.lane.b32.xlu0 %v437, 90
      %v1748 = vpop.permute.xlu0 %1747
      %vm1749 = vcmask 736256
      %v1750 = vsel %vm1749, %v1744, %v1746
      %v1751 = vsel %vm1749, %v1746, %v1748
      %v1753 = vsel %vm455, %v1742, 0
      %v1755 = vsel %vm459, %v1750, 0
      %v1757 = vsel %vm459, %v1751, 0
      %v1759 = vsel %vm459, %v1748, 0
      %1761 = vmatprep.subr.mxu0 %v1757
      %1762 = vmatpush1.msra.mxu0 %v1755
      %1763 = vmatprep.subr.mxu0 0.0
      %1764 = vmatpush1.msra.mxu0 0.0
      %1765 = vmatprep.subr.mxu0 0.0
      %1766 = vmatpush1.msra.mxu0 0.0
      %1767 = vmatprep.subr.mxu0 0.0
      %1768 = vmatpush1.msra.mxu0 0.0
      %1769 = vmatprep.subr.mxu0 0.0
      %1770 = vmatpush1.msra.mxu0 0.0
      %1771 = vmatprep.subr.mxu0 0.0
      %1772 = vmatpush1.msra.mxu0 0.0
      %1773 = vmatprep.subr.mxu0 0.0
      %1774 = vmatpush1.msra.mxu0 0.0
      %1775 = vmatprep.subr.mxu0 0.0
      %1776 = vmatpush1.msra.mxu0 0.0
      %1777 = vmatprep.subr.mxu0 0.0
      %1778 = vmatpush1.msra.mxu0 0.0
      %1779 = vmatprep.subr.mxu0 0.0
      %1780 = vmatpush1.msra.mxu0 0.0
      %1781 = vmatprep.subr.mxu0 0.0
      %1782 = vmatpush1.msra.mxu0 0.0
      %1783 = vmatprep.subr.mxu0 0.0
      %1784 = vmatpush1.msra.mxu0 0.0
      %1785 = vmatprep.subr.mxu0 0.0
      %1786 = vmatpush1.msra.mxu0 0.0
      %1787 = vmatprep.subr.mxu0 0.0
      %1788 = vmatpush1.msra.mxu0 0.0
      %1789 = vmatprep.subr.mxu0 0.0
      %1790 = vmatpush1.msra.mxu0 0.0
      %1791 = vmatprep.subr.mxu0 0.0
      %1792 = vmatpush1.msra.mxu0 0.0
      %1793 = vmatprep.subr.mxu0 0.0
      %1794 = vmatpush1.msra.mxu0 0.0
      %1795 = vmatprep.subr.mxu0 0.0
      %1796 = vmatpush1.msra.mxu0 0.0
      %1797 = vmatprep.subr.mxu0 0.0
      %1798 = vmatpush1.msra.mxu0 0.0
      %1799 = vmatprep.subr.mxu0 0.0
      %1800 = vmatpush1.msra.mxu0 0.0
      %1801 = vmatprep.subr.mxu0 0.0
      %1802 = vmatpush1.msra.mxu0 0.0
      %1803 = vmatprep.subr.mxu0 0.0
      %1804 = vmatpush1.msra.mxu0 0.0
      %1805 = vmatprep.subr.mxu0 0.0
      %1806 = vmatpush1.msra.mxu0 0.0
      %1807 = vmatprep.subr.mxu0 0.0
      %1808 = vmatpush1.msra.mxu0 0.0
      %1809 = vmatprep.subr.mxu0 0.0
      %1810 = vmatpush1.msra.mxu0 0.0
      %1811 = vmatprep.subr.mxu0 0.0
      %1812 = vmatpush1.msra.mxu0 0.0
      %1813 = vmatprep.subr.mxu0 0.0
      %1814 = vmatpush1.msra.mxu0 0.0
      %1815 = vmatprep.subr.mxu0 0.0
      %1816 = vmatpush1.msra.mxu0 0.0
      %1817 = vmatprep.subr.mxu0 0.0
      %1818 = vmatpush1.msra.mxu0 0.0
      %1819 = vmatprep.subr.mxu0 0.0
      %1820 = vmatpush1.msra.mxu0 0.0
      %1821 = vmatprep.subr.mxu0 0.0
      %1822 = vmatpush1.msra.mxu0 0.0
      %1823 = vmatprep.subr.mxu0 0.0
      %1824 = vmatpush1.msra.mxu0 0.0
      %1825 = vmatprep.mubr.f32.mxu0 0.0
      %1826 = vmatmul.mubr.f32.gmra.mrb[0].mxu0 %v1753
      %v1827 = vpop.f32.mrb[0].mxu0
      %v1828 = vadd.f32 0.0, %v1827
      %v1829 = vpop.f32.mrb[0].mxu0
      %v1830 = vadd.f32 0.0, %v1829
      %1831 = vdwg.mxu0
      %1832 = vmatprep.subr.mxu0 0.0
      %1833 = vmatpush1.msra.mxu0 %v1759
      %1834 = vmatprep.subr.mxu0 0.0
      %1835 = vmatpush1.msra.mxu0 0.0
      %1836 = vmatprep.subr.mxu0 0.0
      %1837 = vmatpush1.msra.mxu0 0.0
      %1838 = vmatprep.subr.mxu0 0.0
      %1839 = vmatpush1.msra.mxu0 0.0
      %1840 = vmatprep.subr.mxu0 0.0
      %1841 = vmatpush1.msra.mxu0 0.0
      %1842 = vmatprep.subr.mxu0 0.0
      %1843 = vmatpush1.msra.mxu0 0.0
      %1844 = vmatprep.subr.mxu0 0.0
      %1845 = vmatpush1.msra.mxu0 0.0
      %1846 = vmatprep.subr.mxu0 0.0
      %1847 = vmatpush1.msra.mxu0 0.0
      %1848 = vmatprep.subr.mxu0 0.0
      %1849 = vmatpush1.msra.mxu0 0.0
      %1850 = vmatprep.subr.mxu0 0.0
      %1851 = vmatpush1.msra.mxu0 0.0
      %1852 = vmatprep.subr.mxu0 0.0
      %1853 = vmatpush1.msra.mxu0 0.0
      %1854 = vmatprep.subr.mxu0 0.0
      %1855 = vmatpush1.msra.mxu0 0.0
      %1856 = vmatprep.subr.mxu0 0.0
      %1857 = vmatpush1.msra.mxu0 0.0
      %1858 = vmatprep.subr.mxu0 0.0
      %1859 = vmatpush1.msra.mxu0 0.0
      %1860 = vmatprep.subr.mxu0 0.0
      %1861 = vmatpush1.msra.mxu0 0.0
      %1862 = vmatprep.subr.mxu0 0.0
      %1863 = vmatpush1.msra.mxu0 0.0
      %1864 = vmatprep.subr.mxu0 0.0
      %1865 = vmatpush1.msra.mxu0 0.0
      %1866 = vmatprep.subr.mxu0 0.0
      %1867 = vmatpush1.msra.mxu0 0.0
      %1868 = vmatprep.subr.mxu0 0.0
      %1869 = vmatpush1.msra.mxu0 0.0
      %1870 = vmatprep.subr.mxu0 0.0
      %1871 = vmatpush1.msra.mxu0 0.0
      %1872 = vmatprep.subr.mxu0 0.0
      %1873 = vmatpush1.msra.mxu0 0.0
      %1874 = vmatprep.subr.mxu0 0.0
      %1875 = vmatpush1.msra.mxu0 0.0
      %1876 = vmatprep.subr.mxu0 0.0
      %1877 = vmatpush1.msra.mxu0 0.0
      %1878 = vmatprep.subr.mxu0 0.0
      %1879 = vmatpush1.msra.mxu0 0.0
      %1880 = vmatprep.subr.mxu0 0.0
      %1881 = vmatpush1.msra.mxu0 0.0
      %1882 = vmatprep.subr.mxu0 0.0
      %1883 = vmatpush1.msra.mxu0 0.0
      %1884 = vmatprep.subr.mxu0 0.0
      %1885 = vmatpush1.msra.mxu0 0.0
      %1886 = vmatprep.subr.mxu0 0.0
      %1887 = vmatpush1.msra.mxu0 0.0
      %1888 = vmatprep.subr.mxu0 0.0
      %1889 = vmatpush1.msra.mxu0 0.0
      %1890 = vmatprep.subr.mxu0 0.0
      %1891 = vmatpush1.msra.mxu0 0.0
      %1892 = vmatprep.subr.mxu0 0.0
      %1893 = vmatpush1.msra.mxu0 0.0
      %1894 = vmatprep.subr.mxu0 0.0
      %1895 = vmatpush1.msra.mxu0 0.0
      %1896 = vmatprep.mubr.f32.mxu0 0.0
      %1897 = vmatmul.mubr.f32.gmra.mrb[0].mxu0 %v1753
      %v1898 = vpop.f32.mrb[0].mxu0
      %v1899 = vadd.f32 0.0, %v1898
      %v1900 = vpop.f32.mrb[0].mxu0
      %1901 = vdwg.mxu0
      %v1902 = vadd.f32 %v1738, %v1828
      %v1903 = vadd.f32 %v1739, %v1830
      %v1904 = vadd.f32 %v1740, %v1899
      %1905 = vst [vmem:[%s261] sm:$0xff] %v1902
      %1906 = vst [vmem:[%s261 + $0x8] sm:$0xff] %v1903
      %vm1907 = vcmask 261120
      %1908 = vst.msk [vmem:[%s261 + $0x10] sm:$0xff] %vm1907, %v1904
      %v1909 = vld [vmem:[%s3] sm:$0x7]
      %v1911 = vlaneseq
      %v1912 = vshrl.u32 %v1911, 7
      %v1913 = vsub.s32 0, %v1912
      %v1914 = vrot.slane %v1909, %v1913
      %v1915 = vlaneseq
      %v1916 = vshrl.u32 %v1915, 7
      %v1917 = vsub.s32 1, %v1916
      %v1918 = vrot.slane %v1909, %v1917
      %v1919 = vlaneseq
      %v1920 = vshrl.u32 %v1919, 7
      %v1921 = vsub.s32 2, %v1920
      %v1922 = vrot.slane %v1909, %v1921
      %v1926 = vmul.f32 %v1902, %v1914
      %v1927 = vmul.f32 %v1903, %v1918
      %v1928 = vmul.f32 %v1904, %v1922
      %v1929 = vadd.f32 %v1926, %v1927
      %v1930 = vsel %vm1907, %v1928, 0.0
      %v1931 = vadd.f32 %v1929, %v1930
      %1932 = vadd.xlane.f32.xlu0 %v1931
      %v1933 = vpop.xlane.xlu0 %1932
      %vm1934 = vcmask 7168
      %1935 = vst.msk [vmem:[%s265] sm:$0xff] %vm1934, %v1933
      %v1936 = vmul.f32 %v1926, %v1926
      %v1937 = vmul.f32 %v1927, %v1927
      %v1938 = vmul.f32 %v1928, %v1928
      %v1939 = vadd.f32 %v1936, %v1937
      %v1940 = vsel %vm1907, %v1938, 0.0
      %v1941 = vadd.f32 %v1939, %v1940
      %1942 = vadd.xlane.f32.xlu0 %v1941
      %v1943 = vpop.xlane.xlu0 %1942
      %1944 = vst.msk [vmem:[%s269] sm:$0xff] %vm1934, %v1943
      %p1945 = scmp.lt.s32.totalorder %s18, 1
      %s1946 = scalar_select %p1945, %s18, 1
      %s1947 = smul.addr %s1946, 3
      %s1948 = smul.addr %s1947, 8
      %s1949 = scalar_lea.vmem %s4, %s1948
      %p1950 = scmp.lt.s32.totalorder %s18, 1
      %s1951 = scalar_select %p1950, %s18, 1
      %s1952 = smul.addr %s1951, 8
      %s1953 = scalar_lea.vmem %s5, %s1952
      %p1954 = scmp.lt.s32.totalorder %s18, 1
      %s1955 = scalar_select %p1954, %s18, 1
      %s1956 = smul.addr %s1955, 8
      %s1957 = scalar_lea.vmem %s6, %s1956
      // Predicated region
      $region37: #{_up_conv_impl.2} parent=35 // pred_check
        %p1958 = pneg %p125
      $region38: #{_up_conv_impl.2} parent=35 // pred_check_branch
        %1960 = sbr.rel (%p1958) target = $region40
      $region39: #{_up_conv_impl.2} parent=35 // pred_region
        _
      $region40: #{_up_conv_impl.2} parent=35 // pred_fallthru
        _
      // Predicated region
      $region41: #{_up_conv_impl.2} parent=35 // pred_check
        %p1961 = pneg %p151
      $region42: #{_up_conv_impl.2} parent=35 // pred_check_branch
        %1963 = sbr.rel (%p1961) target = $region44
      $region43: #{_up_conv_impl.2} parent=35 // pred_region
        _
      $region44: #{_up_conv_impl.2} parent=35 // pred_fallthru
        _
      // Predicated region
      $region45: #{_up_conv_impl.2} parent=35 // pred_check
        %p1964 = pneg %p177
      $region46: #{_up_conv_impl.2} parent=35 // pred_check_branch
        %1966 = sbr.rel (%p1964) target = $region48
      $region47: #{_up_conv_impl.2} parent=35 // pred_region
        _
      $region48: #{_up_conv_impl.2} parent=35 // pred_fallthru
        _
    $region36: #{_up_conv_impl.2} parent=5 // pred_fallthru
      _
    %p1967 = scmp.le.s32.totalorder 2, %s13
    // Predicated region
    $region49: #{_up_conv_impl.2} parent=5 // pred_check
      %p1968 = pneg %p1967
    $region50: #{_up_conv_impl.2} parent=5 // pred_check_branch
      %1970 = sbr.rel (%p1968) target = $region52
    $region51: #{_up_conv_impl.2} parent=5 // pred_region
      %s1971 = ssub.s32 %s13, 2
      // Predicated region
      $region53: #{_up_conv_impl.2} parent=51 // pred_check
        %p1972 = pneg %p131
      $region54: #{_up_conv_impl.2} parent=51 // pred_check_branch
        %1974 = sbr.rel (%p1972) target = $region56
      $region55: #{_up_conv_impl.2} parent=51 // pred_region
        %p1975 = scmp.lt.s32.totalorder %s19, 1
        %s1976 = scalar_select %p1975, %s19, 1
        %s1977 = smul.addr %s1976, 3
        %s1978 = smul.addr %s1977, 8
        %s1979 = scalar_lea.vmem %s4, %s1978
      $region56: #{_up_conv_impl.2} parent=51 // pred_fallthru
        _
      // Predicated region
      $region57: #{_up_conv_impl.2} parent=51 // pred_check
        %p1980 = pneg %p157
      $region58: #{_up_conv_impl.2} parent=51 // pred_check_branch
        %1982 = sbr.rel (%p1980) target = $region60
      $region59: #{_up_conv_impl.2} parent=51 // pred_region
        %p1983 = scmp.lt.s32.totalorder %s19, 1
        %s1984 = scalar_select %p1983, %s19, 1
        %s1985 = smul.addr %s1984, 8
        %s1986 = scalar_lea.vmem %s5, %s1985
      $region60: #{_up_conv_impl.2} parent=51 // pred_fallthru
        _
      // Predicated region
      $region61: #{_up_conv_impl.2} parent=51 // pred_check
        %p1987 = pneg %p183
      $region62: #{_up_conv_impl.2} parent=51 // pred_check_branch
        %1989 = sbr.rel (%p1987) target = $region64
      $region63: #{_up_conv_impl.2} parent=51 // pred_region
        %p1990 = scmp.lt.s32.totalorder %s19, 1
        %s1991 = scalar_select %p1990, %s19, 1
        %s1992 = smul.addr %s1991, 8
        %s1993 = scalar_lea.vmem %s6, %s1992
      $region64: #{_up_conv_impl.2} parent=51 // pred_fallthru
        _
    $region52: #{_up_conv_impl.2} parent=5 // pred_fallthru
      _
  $region6: #{_up_conv_impl.2} parent=0 // loop_footer
    %s17 = sadd.s32 1, %s13
  $region7: #{_up_conv_impl.2} parent=0 // loop_footer_branch
    %12 = sbr.rel target = $region3
  $region8: #{_up_conv_impl.2} parent=0 // loop_exit
    _

</llo_original>
